<compile_context>
chip_gen: v5e
topology: v5e:2x2
jax: 0.10.0
libtpu: 0.0.40
codegen_flags: <defaults>
</compile_context>

<pallas_src>
import jax
import jax.numpy as jnp
from jax import lax
from jax.experimental import pallas as pl
from jax.experimental.pallas import tpu as pltpu

EPS = 1e-5  # PyTorch BatchNorm2d default eps


def _bn_scale_bias(gamma, beta, mean, var):
    """Fold eval-mode BN into per-channel scale/bias, shaped (1, C)."""
    s = gamma / jnp.sqrt(var + EPS)
    b = beta - mean * s
    return s.reshape(1, -1), b.reshape(1, -1)


# ------------------------------ fused Pallas kernel ------------------------------

def lhrh_fused_kernel(x_ref, xh_ref, bn1_ref, b2_ref, bn3_ref,
                      w1_ref, w2_ref, w3_ref, o_ref, p_ref):
    """One grid step = one (image n, tile i of `tho` output rows).

    Pair layout of the last dim of x (2*Cin lanes) and u (2*Ch lanes):
      [..., :C] = channels of column 2*wo (even slot), [..., C:] = column 2*wo+1 (odd).
    p_ref (patch scratch, bf16) lane layout is [dx=1 | dx=2 | dx=0] = [even | odd | left],
    matching the dx-reordered w2.  p_ref row r == padded-u row r:
      row 0 = top halo / conv zero-pad row, rows 1..rows = tile rows, row rows+1 unused.
    """
    f32, bf16 = jnp.float32, jnp.bfloat16

    rows, Wo, two_cin = x_ref.shape          # rows = 2 * tho input rows of this tile
    tho = rows // 2
    cin = two_cin // 2
    ch = w3_ref.shape[1]
    block_diag = (w1_ref.shape[0] == two_cin)   # static (trace-time) path choice
    i = pl.program_id(1)                     # row-tile index inside the image

    def stage1(x2d):
        """ReLU(BN1(x)) @ w1' + b2' -> ReLU, pair layout: (M, 2*Cin) -> (M, 2*Ch) f32.
        BN2's scale is folded into w1'."""
        h = jnp.maximum(x2d * bn1_ref[0:1] + bn1_ref[1:2], 0.0)
        if block_diag:
            # small Cin: one block-diagonal dot fills the MXU K dim
            t = jnp.dot(h.astype(bf16), w1_ref[...], preferred_element_type=f32)
        else:
            # large Cin: two exact-FLOP dots with the shared (Cin, Ch) weight
            te = jnp.dot(h[:, :cin].astype(bf16), w1_ref[...], preferred_element_type=f32)
            to = jnp.dot(h[:, cin:].astype(bf16), w1_ref[...], preferred_element_type=f32)
            t = jnp.concatenate([te, to], axis=-1)
        return jnp.maximum(t + b2_ref[...], 0.0)

    # ---- stage 1 on the tile rows and on the 1-row top halo (x row 2*i*tho - 1) ----
    x_main = x_ref[...]                                        # (rows, Wo, 2*Cin) f32
    u_main = stage1(x_main.reshape(rows * Wo, two_cin)
                    ).reshape(rows, Wo, 2 * ch).astype(bf16)
    top_keep = (i > 0).astype(f32)        # halo row is the conv's zero pad row when i == 0
    u_halo = (stage1(xh_ref[...].reshape(Wo, two_cin)) * top_keep
              ).reshape(1, Wo, 2 * ch).astype(bf16)

    # ---- assemble the 3x3 patch slabs in the bf16 scratch (slice stores, no big concats) ----
    # lanes [0:2*ch]  = u pair (dx = 1, 2)
    p_ref[1:rows + 1, :, 0:2 * ch] = u_main
    p_ref[0:1, :, 0:2 * ch] = u_halo
    # lanes [2*ch:]   = dx = 0 tap = odd slot of the previous pair column (zero at wo == 0)
    p_ref[1:rows + 1, :, 2 * ch:] = jnp.concatenate(
        [jnp.zeros((rows, 1, ch), bf16), u_main[:, :Wo - 1, ch:]], axis=1)
    p_ref[0:1, :, 2 * ch:] = jnp.concatenate(
        [jnp.zeros((1, 1, ch), bf16), u_halo[:, :Wo - 1, ch:]], axis=1)
    # row rows+1 is never read by any tap -> left untouched.

    # ---- branch 1, stage 2: 3x3 stride-2 pad-1 conv = 3 accumulating MXU dots over dy ----
    p4 = p_ref[...].reshape(tho + 1, 2, Wo, 3 * ch)
    taps = (p4[:tho, 0], p4[:tho, 1], p4[1:, 0])               # padded-u rows 2t + dy
    acc = jnp.dot(taps[0].reshape(tho * Wo, 3 * ch), w2_ref[0],
                  preferred_element_type=f32)
    acc = acc + jnp.dot(taps[1].reshape(tho * Wo, 3 * ch), w2_ref[1],
                        preferred_element_type=f32)
    acc = acc + jnp.dot(taps[2].reshape(tho * Wo, 3 * ch), w2_ref[2],
                        preferred_element_type=f32)

    # ---- branch 2: 2x2 max-pool -> ReLU(BN3) -> 1x1 conv (same resident x tile) ----
    xr = x_main.reshape(tho, 2, Wo, two_cin)
    rmax = jnp.maximum(xr[:, 0], xr[:, 1])                     # max over the row pair
    pooled = jnp.maximum(rmax[..., :cin], rmax[..., cin:]).reshape(tho * Wo, cin)
    h2 = jnp.maximum(pooled * bn3_ref[0:1] + bn3_ref[1:2], 0.0)
    out2 = jnp.dot(h2.astype(bf16), w3_ref[...], preferred_element_type=f32)

    # ---- fused channel concat: write each branch straight into its lane slice ----
    o_ref[:, :, 0:ch] = acc.reshape(tho, Wo, ch).astype(o_ref.dtype)
    o_ref[:, :, ch:] = out2.reshape(tho, Wo, ch).astype(o_ref.dtype)


# ------------------------------ tiling / VMEM model --------------------------------

def _vmem_budget_and_limit():
    """(per-tile byte budget, vmem_limit_bytes), per TPU generation.
    96 MiB scoped limit on 128-MiB-VMEM parts (v5e/v6e); conservative 48 MiB on
    64-MiB v7x-class parts or when detection fails."""
    cap = None
    try:
        cap = int(pltpu.get_tpu_info().vmem_capacity_bytes)
    except Exception:
        cap = None
    if cap is not None and cap >= 100 * 1024 * 1024:
        limit = 96 * 1024 * 1024
    else:
        limit = 48 * 1024 * 1024
    return (limit * 3) // 5, limit


def _tile_bytes(tho, Wo, Cin, Ch):
    """Rough per-grid-step VMEM bytes for an output-row tile of `tho` rows:
    double-buffered x/out blocks + bf16 patch scratch + live temporaries + weights."""
    rows = 2 * tho
    x_blk = 2 * rows * Wo * 2 * Cin * 4            # double-buffered x tile
    halo = 2 * Wo * 2 * Cin * 4                    # double-buffered halo row
    out_blk = 2 * tho * Wo * 2 * Ch * 4            # double-buffered output tile
    scratch = (rows + 2) * Wo * 3 * Ch * 2         # bf16 patch scratch
    tmp = (rows * Wo * (2 * Cin + 4 * Ch) * 4      # h1 + stage-1 f32 result
           + 3 * tho * Wo * 3 * Ch * 2             # dy taps (bf16)
           + tho * Wo * (Cin + 3 * Ch) * 4)        # pool + accumulators
    weights = 2 * (2 * Cin * 2 * Ch + 9 * Ch * Ch + Cin * Ch) * 2 \
        + 4 * (5 * Cin + 2 * Ch) * 4
    return x_blk + halo + out_blk + scratch + tmp + weights


def _pick_tile_out_rows(Ho, Wo, Cin, Ch, N, budget):
    """Largest divisor of Ho whose tile fits the VMEM budget, keeping the total grid
    (N * Ho/tho) at >= 2 steps so both of v7x's TensorCores get work."""
    divs = [d for d in range(1, Ho + 1) if Ho % d == 0]
    fits = [d for d in divs if _tile_bytes(d, Wo, Cin, Ch) <= budget] or [1]
    multi = [d for d in fits if N * (Ho // d) >= 2]
    return max(multi if multi else fits)


# --------------------------------- wrapper ---------------------------------------

def lhrh_forward(x_nhwc, params, *, tile_out_rows=None, block_diag_w1=None,
                 interpret=False):
    """LHRH forward. x_nhwc: (N, H, W, Cin) f32, H and W even.
    Returns (N, H/2, W/2, Cout) NHWC with Cout = 2 * Ch."""
    N, H, W, Cin = x_nhwc.shape
    assert H % 2 == 0 and W % 2 == 0, "even spatial dims required (ceil_mode note in header)"
    Ch = params["w1"].shape[1]
    Ho, Wo = H // 2, W // 2
    # TODO(synk): when 2*Ch < 128 (tiny demo channels) pack extra output columns into
    # the lane dim (and pad W so Wo % 8 == 0) for fully lane-dense stores; at realistic
    # DSOD channel counts 2*Ch >= 128 and the output block is already lane-dense.

    budget, vmem_limit = _vmem_budget_and_limit()
    tho = tile_out_rows if tile_out_rows is not None else _pick_tile_out_rows(
        Ho, Wo, Cin, Ch, N, budget)
    assert Ho % tho == 0, (Ho, tho)
    nt = Ho // tho

    # ---- fold BN params (f32), pre-pack weights (bf16) ----
    s1, b1 = _bn_scale_bias(*params["bn1"])            # (1, Cin)
    s2, b2 = _bn_scale_bias(*params["bn2"])            # (1, Ch)
    s3, b3 = _bn_scale_bias(*params["bn3"])            # (1, Cin)

    # pixel-pair packing of x: free contiguous reshape, no HBM copy
    x_pairs = x_nhwc.reshape(N, H, Wo, 2 * Cin)

    bn1p = jnp.concatenate([jnp.tile(s1, (1, 2)), jnp.tile(b1, (1, 2))], axis=0)  # (2, 2*Cin)
    bn3p = jnp.concatenate([s3, b3], axis=0)                                      # (2, Cin)
    b2p = jnp.tile(b2, (1, 2))                                                    # (1, 2*Ch)

    w1s = params["w1"] * s2                             # fold BN2 scale into the 1x1 conv
    if block_diag_w1 is None:
        block_diag_w1 = (2 * Cin) < 256                 # small Cin: fill the MXU K dim
    if block_diag_w1:
        z = jnp.zeros((Cin, Ch), jnp.float32)
        w1in = jnp.concatenate([jnp.concatenate([w1s, z], axis=1),
                                jnp.concatenate([z, w1s], axis=1)],
                               axis=0).astype(jnp.bfloat16)       # (2*Cin, 2*Ch) block-diag
    else:
        w1in = w1s.astype(jnp.bfloat16)                           # (Cin, Ch) exact-FLOP path
    w1_block = tuple(w1in.shape)

    # 3x3 conv weight per dy, dx reordered to the patch lane layout [dx=1 | dx=2 | dx=0]
    w2 = params["w2"]                                             # (3, 3, Ch, Ch) HWIO
    w2p = jnp.concatenate([w2[:, 1], w2[:, 2], w2[:, 0]],
                          axis=1).astype(jnp.bfloat16)            # (3, 3*Ch, Ch)
    w3b = params["w3"].astype(jnp.bfloat16)

    out = pl.pallas_call(
        lhrh_fused_kernel,
        out_shape=jax.ShapeDtypeStruct((N, Ho, Wo, 2 * Ch), jnp.float32),
        grid=(N, nt),
        in_specs=[
            # main x tile: 2*tho input rows
            pl.BlockSpec((None, 2 * tho, Wo, 2 * Cin), lambda n, i: (n, i, 0, 0)),
            # 1-row top halo straight from x (H block size 1 => block index == row index)
            pl.BlockSpec((None, 1, Wo, 2 * Cin),
                         lambda n, i: (n, jnp.maximum(2 * tho * i - 1, 0), 0, 0)),
            pl.BlockSpec((2, 2 * Cin), lambda n, i: (0, 0)),       # BN1 scale/bias (paired)
            pl.BlockSpec((1, 2 * Ch), lambda n, i: (0, 0)),        # BN2 bias (paired)
            pl.BlockSpec((2, Cin), lambda n, i: (0, 0)),           # BN3 scale/bias
            pl.BlockSpec(w1_block, lambda n, i: (0, 0)),           # w1' (BN2 scale folded)
            pl.BlockSpec((3, 3 * Ch, Ch), lambda n, i: (0, 0, 0)),  # w2 per-dy, dx-reordered
            pl.BlockSpec((Cin, Ch), lambda n, i: (0, 0)),          # w3
        ],
        out_specs=pl.BlockSpec((None, tho, Wo, 2 * Ch), lambda n, i: (n, i, 0, 0)),
        scratch_shapes=[pltpu.VMEM((2 * tho + 2, Wo, 3 * Ch), jnp.bfloat16)],
        compiler_params=pltpu.CompilerParams(
            dimension_semantics=("parallel", "parallel"),
            vmem_limit_bytes=vmem_limit,
        ),
        interpret=interpret,
    )(x_pairs, x_pairs, bn1p, b2p, bn3p, w1in, w2p, w3b)
    return out


# ------------------------------ pure-JAX reference --------------------------------

def lhrh_reference(x_nhwc, params):
    g1, be1, m1, v1 = params["bn1"]
    h = jnp.maximum((x_nhwc - m1) / jnp.sqrt(v1 + EPS) * g1 + be1, 0.0)
    t = jnp.einsum("nhwc,cd->nhwd", h, params["w1"])
    g2, be2, m2, v2 = params["bn2"]
    u = jnp.maximum((t - m2) / jnp.sqrt(v2 + EPS) * g2 + be2, 0.0)
    out1 = lax.conv_general_dilated(
        u, params["w2"], window_strides=(2, 2), padding=((1, 1), (1, 1)),
        dimension_numbers=("NHWC", "HWIO", "NHWC"))
    N, H, W, Cin = x_nhwc.shape
    pooled = x_nhwc.reshape(N, H // 2, 2, W // 2, 2, Cin).max(axis=(2, 4))
    g3, be3, m3, v3 = params["bn3"]
    h2 = jnp.maximum((pooled - m3) / jnp.sqrt(v3 + EPS) * g3 + be3, 0.0)
    out2 = jnp.einsum("nhwc,cd->nhwd", h2, params["w3"])
    return jnp.concatenate([out1, out2], axis=-1)


# ----------------------------------- params ---------------------------------------

def make_params(key, in_channels, out_channels):
    Ch = out_channels // 2

    def bn_params(k, c):
        k1, k2, k3, k4 = jax.random.split(k, 4)
        gamma = jax.random.uniform(k1, (c,), jnp.float32, 0.5, 1.5)
        beta = 0.1 * jax.random.normal(k2, (c,), jnp.float32)
        mean = 0.1 * jax.random.normal(k3, (c,), jnp.float32)
        var = jax.random.uniform(k4, (c,), jnp.float32, 0.5, 1.5)
        return gamma, beta, mean, var

    ks = jax.random.split(key, 6)
    return {
        "bn1": bn_params(ks[0], in_channels),
        "w1": 0.1 * jax.random.normal(ks[1], (in_channels, Ch), jnp.float32),   # 1x1 conv
        "bn2": bn_params(ks[2], Ch),
        "w2": 0.1 * jax.random.normal(ks[3], (3, 3, Ch, Ch), jnp.float32),      # 3x3 conv, HWIO
        "bn3": bn_params(ks[4], in_channels),
        "w3": 0.1 * jax.random.normal(ks[5], (in_channels, Ch), jnp.float32),   # 1x1 conv
    }


# ------------------------------------ main -----------------------------------------

if __name__ == "__main__":
    key = jax.random.PRNGKey(0)
    N, Cin, H, W = 2, 4, 16, 16
    Cout = 8  # each branch produces Cout // 2 channels

    kx, kp = jax.random.split(key)
    x_nchw = jax.random.normal(kx, (N, Cin, H, W), jnp.float32)   # PyTorch layout
    x_nhwc = jnp.transpose(x_nchw, (0, 2, 3, 1))                  # kernel layout (NHWC)
    params = make_params(kp, Cin, Cout)

    fwd = jax.jit(lhrh_forward,
                  static_argnames=("tile_out_rows", "block_diag_w1", "interpret"))
    ref = jax.block_until_ready(lhrh_reference(x_nhwc, params))

    # default path: auto tile pick + block-diagonal stage-1 weight (small Cin)
    out = jax.block_until_ready(fwd(x_nhwc, params))              # (2, 8, 8, 8) NHWC
    assert out.shape == (N, H // 2, W // 2, Cout), out.shape
    err = float(jnp.max(jnp.abs(out - ref)))
    assert jnp.allclose(out, ref, atol=1e-2, rtol=1e-2), err

    # also exercise the exact-FLOP (un-paired w1) stage-1 path and a multi-tile grid
    # (nt = 2, so the top-halo row is actually used)
    out2 = jax.block_until_ready(
        fwd(x_nhwc, params, tile_out_rows=4, block_diag_w1=False))
    err2 = float(jnp.max(jnp.abs(out2 - ref)))
    assert jnp.allclose(out2, ref, atol=1e-2, rtol=1e-2), err2

    print("KERNEL_OK")
</pallas_src>

<mosaic_0001>
module attributes {stable_mosaic.version = 11 : i64} {
  func.func @lhrh_fused_kernel(%arg0: i32, %arg1: i32, %arg2: memref<1x16x8x8xf32, #tpu.memory_space<vmem>>, %arg3: memref<1x1x8x8xf32, #tpu.memory_space<vmem>>, %arg4: memref<2x8xf32, #tpu.memory_space<vmem>>, %arg5: memref<1x8xf32, #tpu.memory_space<vmem>>, %arg6: memref<2x4xf32, #tpu.memory_space<vmem>>, %arg7: memref<8x8xbf16, #tpu.memory_space<vmem>>, %arg8: memref<3x12x4xbf16, #tpu.memory_space<vmem>>, %arg9: memref<4x4xbf16, #tpu.memory_space<vmem>>, %arg10: memref<1x8x8x8xf32, #tpu.memory_space<vmem>>, %arg11: memref<18x8x12xbf16, #tpu.memory_space<vmem>>) attributes {dimension_semantics = [#tpu.dimension_semantics<parallel>, #tpu.dimension_semantics<parallel>], iteration_bounds = array<i64: 2, 1>, scalar_prefetch = 0 : i64, scratch_operands = 1 : i64, tpu.core_type = #tpu.core_type<tc>, window_params = [{transform_indices = @transform_0, window_bounds = array<i64: 1, 16, 8, 8>}, {transform_indices = @transform_1, window_bounds = array<i64: 1, 1, 8, 8>}, {pipeline_mode = #tpu.pipeline_mode<synchronous>, transform_indices = @transform_2, window_bounds = array<i64: 2, 8>}, {pipeline_mode = #tpu.pipeline_mode<synchronous>, transform_indices = @transform_3, window_bounds = array<i64: 1, 8>}, {pipeline_mode = #tpu.pipeline_mode<synchronous>, transform_indices = @transform_4, window_bounds = array<i64: 2, 4>}, {pipeline_mode = #tpu.pipeline_mode<synchronous>, transform_indices = @transform_5, window_bounds = array<i64: 8, 8>}, {pipeline_mode = #tpu.pipeline_mode<synchronous>, transform_indices = @transform_6, window_bounds = array<i64: 3, 12, 4>}, {pipeline_mode = #tpu.pipeline_mode<synchronous>, transform_indices = @transform_7, window_bounds = array<i64: 4, 4>}, {transform_indices = @transform_8, window_bounds = array<i64: 1, 8, 8, 8>}]} {
    %c0 = arith.constant 0 : index
    %c0_0 = arith.constant 0 : index
    %c0_1 = arith.constant 0 : index
    %c0_2 = arith.constant 0 : index
    %0 = vector.load %arg2[%c0, %c0_0, %c0_1, %c0_2] : memref<1x16x8x8xf32, #tpu.memory_space<vmem>>, vector<1x16x8x8xf32>
    %1 = vector.shape_cast %0 : vector<1x16x8x8xf32> to vector<16x8x8xf32>
    %2 = vector.shape_cast %1 : vector<16x8x8xf32> to vector<128x8xf32>
    %c0_3 = arith.constant 0 : index
    %c0_4 = arith.constant 0 : index
    %3 = vector.load %arg4[%c0_3, %c0_4] : memref<2x8xf32, #tpu.memory_space<vmem>>, vector<1x8xf32>
    %4 = vector.broadcast %3 : vector<1x8xf32> to vector<128x8xf32>
    %5 = arith.mulf %2, %4 : vector<128x8xf32>
    %c1 = arith.constant 1 : index
    %c0_5 = arith.constant 0 : index
    %6 = vector.load %arg4[%c1, %c0_5] : memref<2x8xf32, #tpu.memory_space<vmem>>, vector<1x8xf32>
    %7 = vector.broadcast %6 : vector<1x8xf32> to vector<128x8xf32>
    %8 = arith.addf %5, %7 : vector<128x8xf32>
    %cst = arith.constant 0.000000e+00 : f32
    %9 = vector.broadcast %cst : f32 to vector<128x8xf32>
    %10 = arith.maximumf %8, %9 : vector<128x8xf32>
    %11 = arith.truncf %10 : vector<128x8xf32> to vector<128x8xbf16>
    %c0_6 = arith.constant 0 : index
    %c0_7 = arith.constant 0 : index
    %12 = vector.load %arg7[%c0_6, %c0_7] : memref<8x8xbf16, #tpu.memory_space<vmem>>, vector<8x8xbf16>
    %cst_8 = arith.constant dense<0.000000e+00> : vector<128x8xf32>
    %13 = tpu.matmul %11, %12, %cst_8 {dimension_numbers = #tpu.dot_dimension_numbers<[1], [0], [0], [1], [0, 0, 1, 1], [], []>} : vector<128x8xbf16>, vector<8x8xbf16>, vector<128x8xf32> -> vector<128x8xf32>
    %c0_9 = arith.constant 0 : index
    %c0_10 = arith.constant 0 : index
    %14 = vector.load %arg5[%c0_9, %c0_10] : memref<1x8xf32, #tpu.memory_space<vmem>>, vector<1x8xf32>
    %15 = vector.broadcast %14 : vector<1x8xf32> to vector<128x8xf32>
    %16 = arith.addf %13, %15 : vector<128x8xf32>
    %cst_11 = arith.constant 0.000000e+00 : f32
    %17 = vector.broadcast %cst_11 : f32 to vector<128x8xf32>
    %18 = arith.maximumf %16, %17 : vector<128x8xf32>
    %19 = vector.shape_cast %18 : vector<128x8xf32> to vector<16x8x8xf32>
    %20 = arith.truncf %19 : vector<16x8x8xf32> to vector<16x8x8xbf16>
    %c0_i32 = arith.constant 0 : i32
    %21 = arith.cmpi sgt, %arg1, %c0_i32 : i32
    %22 = arith.extui %21 : i1 to i32
    %23 = arith.sitofp %22 : i32 to f32
    %c0_12 = arith.constant 0 : index
    %c0_13 = arith.constant 0 : index
    %c0_14 = arith.constant 0 : index
    %c0_15 = arith.constant 0 : index
    %24 = vector.load %arg3[%c0_12, %c0_13, %c0_14, %c0_15] : memref<1x1x8x8xf32, #tpu.memory_space<vmem>>, vector<1x1x8x8xf32>
    %25 = vector.shape_cast %24 : vector<1x1x8x8xf32> to vector<1x8x8xf32>
    %26 = vector.shape_cast %25 : vector<1x8x8xf32> to vector<8x8xf32>
    %c0_16 = arith.constant 0 : index
    %c0_17 = arith.constant 0 : index
    %27 = vector.load %arg4[%c0_16, %c0_17] : memref<2x8xf32, #tpu.memory_space<vmem>>, vector<1x8xf32>
    %28 = vector.broadcast %27 : vector<1x8xf32> to vector<8x8xf32>
    %29 = arith.mulf %26, %28 : vector<8x8xf32>
    %c1_18 = arith.constant 1 : index
    %c0_19 = arith.constant 0 : index
    %30 = vector.load %arg4[%c1_18, %c0_19] : memref<2x8xf32, #tpu.memory_space<vmem>>, vector<1x8xf32>
    %31 = vector.broadcast %30 : vector<1x8xf32> to vector<8x8xf32>
    %32 = arith.addf %29, %31 : vector<8x8xf32>
    %cst_20 = arith.constant 0.000000e+00 : f32
    %33 = vector.broadcast %cst_20 : f32 to vector<8x8xf32>
    %34 = arith.maximumf %32, %33 : vector<8x8xf32>
    %35 = arith.truncf %34 : vector<8x8xf32> to vector<8x8xbf16>
    %c0_21 = arith.constant 0 : index
    %c0_22 = arith.constant 0 : index
    %36 = vector.load %arg7[%c0_21, %c0_22] : memref<8x8xbf16, #tpu.memory_space<vmem>>, vector<8x8xbf16>
    %cst_23 = arith.constant dense<0.000000e+00> : vector<8x8xf32>
    %37 = tpu.matmul %35, %36, %cst_23 {dimension_numbers = #tpu.dot_dimension_numbers<[1], [0], [0], [1], [0, 0, 1, 1], [], []>} : vector<8x8xbf16>, vector<8x8xbf16>, vector<8x8xf32> -> vector<8x8xf32>
    %c0_24 = arith.constant 0 : index
    %c0_25 = arith.constant 0 : index
    %38 = vector.load %arg5[%c0_24, %c0_25] : memref<1x8xf32, #tpu.memory_space<vmem>>, vector<1x8xf32>
    %39 = vector.broadcast %38 : vector<1x8xf32> to vector<8x8xf32>
    %40 = arith.addf %37, %39 : vector<8x8xf32>
    %cst_26 = arith.constant 0.000000e+00 : f32
    %41 = vector.broadcast %cst_26 : f32 to vector<8x8xf32>
    %42 = arith.maximumf %40, %41 : vector<8x8xf32>
    %43 = vector.broadcast %23 : f32 to vector<8x8xf32>
    %44 = arith.mulf %42, %43 : vector<8x8xf32>
    %45 = vector.shape_cast %44 : vector<8x8xf32> to vector<1x8x8xf32>
    %46 = arith.truncf %45 : vector<1x8x8xf32> to vector<1x8x8xbf16>
    %c1_27 = arith.constant 1 : index
    %c0_28 = arith.constant 0 : index
    %c0_29 = arith.constant 0 : index
    %47 = vector.load %arg11[%c1_27, %c0_28, %c0_29] : memref<18x8x12xbf16, #tpu.memory_space<vmem>>, vector<16x8x8xbf16>
    tpu.vector_store %arg11[%c1_27, %c0_28, %c0_29], %20 {strides = array<i32>} : memref<18x8x12xbf16, #tpu.memory_space<vmem>>, vector<16x8x8xbf16>,
    %c0_30 = arith.constant 0 : index
    %c0_31 = arith.constant 0 : index
    %c0_32 = arith.constant 0 : index
    %48 = vector.load %arg11[%c0_30, %c0_31, %c0_32] : memref<18x8x12xbf16, #tpu.memory_space<vmem>>, vector<1x8x8xbf16>
    tpu.vector_store %arg11[%c0_30, %c0_31, %c0_32], %46 {strides = array<i32>} : memref<18x8x12xbf16, #tpu.memory_space<vmem>>, vector<1x8x8xbf16>,
    %cst_33 = arith.constant 0.000000e+00 : bf16
    %49 = vector.broadcast %cst_33 : bf16 to vector<16x1x4xbf16>
    %50 = vector.extract_strided_slice %20 {offsets = [0, 0, 4], sizes = [16, 7, 4], strides = [1, 1, 1]} : vector<16x8x8xbf16> to vector<16x7x4xbf16>
    %51 = tpu.concatenate %49, %50 in 1 : vector<16x1x4xbf16>, vector<16x7x4xbf16> -> vector<16x8x4xbf16>
    %c1_34 = arith.constant 1 : index
    %c0_35 = arith.constant 0 : index
    %c8 = arith.constant 8 : index
    %52 = vector.load %arg11[%c1_34, %c0_35, %c8] : memref<18x8x12xbf16, #tpu.memory_space<vmem>>, vector<16x8x4xbf16>
    tpu.vector_store %arg11[%c1_34, %c0_35, %c8], %51 {strides = array<i32>} : memref<18x8x12xbf16, #tpu.memory_space<vmem>>, vector<16x8x4xbf16>,
    %cst_36 = arith.constant 0.000000e+00 : bf16
    %53 = vector.broadcast %cst_36 : bf16 to vector<1x1x4xbf16>
    %54 = vector.extract_strided_slice %46 {offsets = [0, 0, 4], sizes = [1, 7, 4], strides = [1, 1, 1]} : vector<1x8x8xbf16> to vector<1x7x4xbf16>
    %55 = tpu.concatenate %53, %54 in 1 : vector<1x1x4xbf16>, vector<1x7x4xbf16> -> vector<1x8x4xbf16>
    %c0_37 = arith.constant 0 : index
    %c0_38 = arith.constant 0 : index
    %c8_39 = arith.constant 8 : index
    %56 = vector.load %arg11[%c0_37, %c0_38, %c8_39] : memref<18x8x12xbf16, #tpu.memory_space<vmem>>, vector<1x8x4xbf16>
    tpu.vector_store %arg11[%c0_37, %c0_38, %c8_39], %55 {strides = array<i32>} : memref<18x8x12xbf16, #tpu.memory_space<vmem>>, vector<1x8x4xbf16>,
    %c0_40 = arith.constant 0 : index
    %c0_41 = arith.constant 0 : index
    %c0_42 = arith.constant 0 : index
    %57 = vector.load %arg11[%c0_40, %c0_41, %c0_42] : memref<18x8x12xbf16, #tpu.memory_space<vmem>>, vector<18x8x12xbf16>
    %58 = vector.shape_cast %57 : vector<18x8x12xbf16> to vector<9x2x8x12xbf16>
    %59 = vector.extract_strided_slice %58 {offsets = [0, 0, 0, 0], sizes = [8, 1, 8, 12], strides = [1, 1, 1, 1]} : vector<9x2x8x12xbf16> to vector<8x1x8x12xbf16>
    %60 = vector.shape_cast %59 : vector<8x1x8x12xbf16> to vector<8x8x12xbf16>
    %61 = vector.extract_strided_slice %58 {offsets = [0, 1, 0, 0], sizes = [8, 1, 8, 12], strides = [1, 1, 1, 1]} : vector<9x2x8x12xbf16> to vector<8x1x8x12xbf16>
    %62 = vector.shape_cast %61 : vector<8x1x8x12xbf16> to vector<8x8x12xbf16>
    %63 = vector.extract_strided_slice %58 {offsets = [1, 0, 0, 0], sizes = [8, 1, 8, 12], strides = [1, 1, 1, 1]} : vector<9x2x8x12xbf16> to vector<8x1x8x12xbf16>
    %64 = vector.shape_cast %63 : vector<8x1x8x12xbf16> to vector<8x8x12xbf16>
    %65 = vector.shape_cast %60 : vector<8x8x12xbf16> to vector<64x12xbf16>
    %c0_43 = arith.constant 0 : index
    %c0_44 = arith.constant 0 : index
    %c0_45 = arith.constant 0 : index
    %66 = vector.load %arg8[%c0_43, %c0_44, %c0_45] : memref<3x12x4xbf16, #tpu.memory_space<vmem>>, vector<1x12x4xbf16>
    %67 = vector.shape_cast %66 : vector<1x12x4xbf16> to vector<12x4xbf16>
    %cst_46 = arith.constant dense<0.000000e+00> : vector<64x4xf32>
    %68 = tpu.matmul %65, %67, %cst_46 {dimension_numbers = #tpu.dot_dimension_numbers<[1], [0], [0], [1], [0, 0, 1, 1], [], []>} : vector<64x12xbf16>, vector<12x4xbf16>, vector<64x4xf32> -> vector<64x4xf32>
    %69 = vector.shape_cast %62 : vector<8x8x12xbf16> to vector<64x12xbf16>
    %c1_47 = arith.constant 1 : index
    %c0_48 = arith.constant 0 : index
    %c0_49 = arith.constant 0 : index
    %70 = vector.load %arg8[%c1_47, %c0_48, %c0_49] : memref<3x12x4xbf16, #tpu.memory_space<vmem>>, vector<1x12x4xbf16>
    %71 = vector.shape_cast %70 : vector<1x12x4xbf16> to vector<12x4xbf16>
    %cst_50 = arith.constant dense<0.000000e+00> : vector<64x4xf32>
    %72 = tpu.matmul %69, %71, %cst_50 {dimension_numbers = #tpu.dot_dimension_numbers<[1], [0], [0], [1], [0, 0, 1, 1], [], []>} : vector<64x12xbf16>, vector<12x4xbf16>, vector<64x4xf32> -> vector<64x4xf32>
    %73 = arith.addf %68, %72 : vector<64x4xf32>
    %74 = vector.shape_cast %64 : vector<8x8x12xbf16> to vector<64x12xbf16>
    %c2 = arith.constant 2 : index
    %c0_51 = arith.constant 0 : index
    %c0_52 = arith.constant 0 : index
    %75 = vector.load %arg8[%c2, %c0_51, %c0_52] : memref<3x12x4xbf16, #tpu.memory_space<vmem>>, vector<1x12x4xbf16>
    %76 = vector.shape_cast %75 : vector<1x12x4xbf16> to vector<12x4xbf16>
    %cst_53 = arith.constant dense<0.000000e+00> : vector<64x4xf32>
    %77 = tpu.matmul %74, %76, %cst_53 {dimension_numbers = #tpu.dot_dimension_numbers<[1], [0], [0], [1], [0, 0, 1, 1], [], []>} : vector<64x12xbf16>, vector<12x4xbf16>, vector<64x4xf32> -> vector<64x4xf32>
    %78 = arith.addf %73, %77 : vector<64x4xf32>
    %79 = vector.shape_cast %1 : vector<16x8x8xf32> to vector<8x2x8x8xf32>
    %80 = vector.extract_strided_slice %79 {offsets = [0, 0, 0, 0], sizes = [8, 1, 8, 8], strides = [1, 1, 1, 1]} : vector<8x2x8x8xf32> to vector<8x1x8x8xf32>
    %81 = vector.shape_cast %80 : vector<8x1x8x8xf32> to vector<8x8x8xf32>
    %82 = vector.extract_strided_slice %79 {offsets = [0, 1, 0, 0], sizes = [8, 1, 8, 8], strides = [1, 1, 1, 1]} : vector<8x2x8x8xf32> to vector<8x1x8x8xf32>
    %83 = vector.shape_cast %82 : vector<8x1x8x8xf32> to vector<8x8x8xf32>
    %84 = arith.maximumf %81, %83 : vector<8x8x8xf32>
    %85 = vector.extract_strided_slice %84 {offsets = [0, 0, 0], sizes = [8, 8, 4], strides = [1, 1, 1]} : vector<8x8x8xf32> to vector<8x8x4xf32>
    %86 = vector.extract_strided_slice %84 {offsets = [0, 0, 4], sizes = [8, 8, 4], strides = [1, 1, 1]} : vector<8x8x8xf32> to vector<8x8x4xf32>
    %87 = arith.maximumf %85, %86 : vector<8x8x4xf32>
    %88 = vector.shape_cast %87 : vector<8x8x4xf32> to vector<64x4xf32>
    %c0_54 = arith.constant 0 : index
    %c0_55 = arith.constant 0 : index
    %89 = vector.load %arg6[%c0_54, %c0_55] : memref<2x4xf32, #tpu.memory_space<vmem>>, vector<1x4xf32>
    %90 = vector.broadcast %89 : vector<1x4xf32> to vector<64x4xf32>
    %91 = arith.mulf %88, %90 : vector<64x4xf32>
    %c1_56 = arith.constant 1 : index
    %c0_57 = arith.constant 0 : index
    %92 = vector.load %arg6[%c1_56, %c0_57] : memref<2x4xf32, #tpu.memory_space<vmem>>, vector<1x4xf32>
    %93 = vector.broadcast %92 : vector<1x4xf32> to vector<64x4xf32>
    %94 = arith.addf %91, %93 : vector<64x4xf32>
    %cst_58 = arith.constant 0.000000e+00 : f32
    %95 = vector.broadcast %cst_58 : f32 to vector<64x4xf32>
    %96 = arith.maximumf %94, %95 : vector<64x4xf32>
    %97 = arith.truncf %96 : vector<64x4xf32> to vector<64x4xbf16>
    %c0_59 = arith.constant 0 : index
    %c0_60 = arith.constant 0 : index
    %98 = vector.load %arg9[%c0_59, %c0_60] : memref<4x4xbf16, #tpu.memory_space<vmem>>, vector<4x4xbf16>
    %cst_61 = arith.constant dense<0.000000e+00> : vector<64x4xf32>
    %99 = tpu.matmul %97, %98, %cst_61 {dimension_numbers = #tpu.dot_dimension_numbers<[1], [0], [0], [1], [0, 0, 1, 1], [], []>} : vector<64x4xbf16>, vector<4x4xbf16>, vector<64x4xf32> -> vector<64x4xf32>
    %100 = vector.shape_cast %78 : vector<64x4xf32> to vector<8x8x4xf32>
    %c0_62 = arith.constant 0 : index
    %c0_63 = arith.constant 0 : index
    %c0_64 = arith.constant 0 : index
    %c0_65 = arith.constant 0 : index
    %101 = vector.load %arg10[%c0_62, %c0_63, %c0_64, %c0_65] : memref<1x8x8x8xf32, #tpu.memory_space<vmem>>, vector<1x8x8x4xf32>
    %102 = vector.shape_cast %101 : vector<1x8x8x4xf32> to vector<8x8x4xf32>
    %103 = vector.shape_cast %100 : vector<8x8x4xf32> to vector<1x8x8x4xf32>
    tpu.vector_store %arg10[%c0_62, %c0_63, %c0_64, %c0_65], %103 {strides = array<i32>} : memref<1x8x8x8xf32, #tpu.memory_space<vmem>>, vector<1x8x8x4xf32>,
    %104 = vector.shape_cast %99 : vector<64x4xf32> to vector<8x8x4xf32>
    %c0_66 = arith.constant 0 : index
    %c0_67 = arith.constant 0 : index
    %c0_68 = arith.constant 0 : index
    %c4 = arith.constant 4 : index
    %105 = vector.load %arg10[%c0_66, %c0_67, %c0_68, %c4] : memref<1x8x8x8xf32, #tpu.memory_space<vmem>>, vector<1x8x8x4xf32>
    %106 = vector.shape_cast %105 : vector<1x8x8x4xf32> to vector<8x8x4xf32>
    %107 = vector.shape_cast %104 : vector<8x8x4xf32> to vector<1x8x8x4xf32>
    tpu.vector_store %arg10[%c0_66, %c0_67, %c0_68, %c4], %107 {strides = array<i32>} : memref<1x8x8x8xf32, #tpu.memory_space<vmem>>, vector<1x8x8x4xf32>,
    return
  }
  func.func @transform_0(%arg0: i32, %arg1: i32) -> (i32, i32, i32, i32) {
    %c0_i32 = arith.constant 0 : i32
    %c0_i32_0 = arith.constant 0 : i32
    %c0_i32_1 = arith.constant 0 : i32
    return %arg0, %arg1, %c0_i32, %c0_i32_0 : i32, i32, i32, i32
  }
  func.func @transform_1(%arg0: i32, %arg1: i32) -> (i32, i32, i32, i32) {
    %c16_i32 = arith.constant 16 : i32
    %0 = arith.muli %c16_i32, %arg1 : i32
    %c1_i32 = arith.constant 1 : i32
    %1 = arith.subi %0, %c1_i32 : i32
    %c0_i32 = arith.constant 0 : i32
    %2 = arith.maxsi %1, %c0_i32 : i32
    %c0_i32_0 = arith.constant 0 : i32
    %c0_i32_1 = arith.constant 0 : i32
    %c0_i32_2 = arith.constant 0 : i32
    return %arg0, %2, %c0_i32_0, %c0_i32_1 : i32, i32, i32, i32
  }
  func.func @transform_2(%arg0: i32, %arg1: i32) -> (i32, i32) {
    %c0_i32 = arith.constant 0 : i32
    %c0_i32_0 = arith.constant 0 : i32
    %c0_i32_1 = arith.constant 0 : i32
    return %c0_i32, %c0_i32_0 : i32, i32
  }
  func.func @transform_3(%arg0: i32, %arg1: i32) -> (i32, i32) {
    %c0_i32 = arith.constant 0 : i32
    %c0_i32_0 = arith.constant 0 : i32
    %c0_i32_1 = arith.constant 0 : i32
    return %c0_i32, %c0_i32_0 : i32, i32
  }
  func.func @transform_4(%arg0: i32, %arg1: i32) -> (i32, i32) {
    %c0_i32 = arith.constant 0 : i32
    %c0_i32_0 = arith.constant 0 : i32
    %c0_i32_1 = arith.constant 0 : i32
    return %c0_i32, %c0_i32_0 : i32, i32
  }
  func.func @transform_5(%arg0: i32, %arg1: i32) -> (i32, i32) {
    %c0_i32 = arith.constant 0 : i32
    %c0_i32_0 = arith.constant 0 : i32
    %c0_i32_1 = arith.constant 0 : i32
    return %c0_i32, %c0_i32_0 : i32, i32
  }
  func.func @transform_6(%arg0: i32, %arg1: i32) -> (i32, i32, i32) {
    %c0_i32 = arith.constant 0 : i32
    %c0_i32_0 = arith.constant 0 : i32
    %c0_i32_1 = arith.constant 0 : i32
    %c0_i32_2 = arith.constant 0 : i32
    return %c0_i32, %c0_i32_0, %c0_i32_1 : i32, i32, i32
  }
  func.func @transform_7(%arg0: i32, %arg1: i32) -> (i32, i32) {
    %c0_i32 = arith.constant 0 : i32
    %c0_i32_0 = arith.constant 0 : i32
    %c0_i32_1 = arith.constant 0 : i32
    return %c0_i32, %c0_i32_0 : i32, i32
  }
  func.func @transform_8(%arg0: i32, %arg1: i32) -> (i32, i32, i32, i32) {
    %c0_i32 = arith.constant 0 : i32
    %c0_i32_0 = arith.constant 0 : i32
    %c0_i32_1 = arith.constant 0 : i32
    return %arg0, %arg1, %c0_i32, %c0_i32_0 : i32, i32, i32, i32
  }
}

</mosaic_0001>

<llo_original>
// kernel: lhrh_forward.1
$region0: #{lhrh_forward.1}
  #allocation0 [shape = 'u32[]', space=smem, size = 0x4, offset = 0x4, fixed_abs, tag = 'smem constant byte address 0x4 - core index']
  #allocation1 [shape = 'u32[72,128]{1,0:T(1,128)}', space=vmem, size = 0x9000, scoped, tag = 'internal scratch']
  #allocation2 [shape = 'bf16[18,8,12]{2,1,0:T(8,128)(2,1)}', space=vmem, size = 0x9000, scoped, tag = 'scratch operand']
  %s0 = inlined_call_operand.vmem [shape: f32[2,16,8,8], index: 0, kind: input, shape index: {}, may-alias: {0,1}]
  %s1 = inlined_call_operand.vmem [shape: f32[2,16,8,8], index: 1, kind: input, shape index: {}, may-alias: {0,1}]
  %s2 = inlined_call_operand.vmem [shape: f32[2,8], index: 2, kind: input, shape index: {}]
  %s3 = inlined_call_operand.vmem [shape: f32[1,8], index: 3, kind: input, shape index: {}]
  %s4 = inlined_call_operand.vmem [shape: f32[2,4], index: 4, kind: input, shape index: {}]
  %s5 = inlined_call_operand.vmem [shape: bf16[8,8], index: 5, kind: input, shape index: {}]
  %s6 = inlined_call_operand.vmem [shape: bf16[3,12,4], index: 6, kind: input, shape index: {}]
  %s7 = inlined_call_operand.vmem [shape: bf16[4,4], index: 7, kind: input, shape index: {}]
  %s8 = inlined_call_operand.hbm [shape: f32[2,8,8,8], index: 8, kind: output, shape index: {}]
  %s9 = sld [smem:[#allocation0]]
  $region65: #{lhrh_forward.1} parent=0
    _
  %s11 = ssub.s32 1, %s9
  %s12 = scalar_select 0, %s11, %s9
  $region1: #{lhrh_forward.1} parent=0
    #allocation3 [shape = 'u8[65536]{0}', space=vmem, size = 0x10000, scoped, tag = 'output window, operand 0']
    #allocation4 [shape = 's32[2]{0}', space=sflag, size = 0x8, scoped, tag = 'scoped memory for lhrh_forward.1']
    %13 = vsyncpa [#allocation4], 0
    %s14 = scalar_lea.sflag [#allocation4], 1
    %15 = vsyncpa %s14, 0
    loop: start=0, step=1, limit=4
    $region2: #{lhrh_forward.1} parent=1 // loop_pre_header
      _
    $region3: #{lhrh_forward.1} parent=1 // loop_header
      %s17 = sphi 0, %s21
      %p18 = scmp.ge.s32.totalorder %s17, 4
      %s24 = sphi 0, %s36
      %s25 = sphi 0, %s32
      %s26 = sphi 0, %s24
      %s27 = sphi 0, %s25
      %s28 = sphi 0, %s26
      %s29 = sphi 0, %s27
      %s41 = sphi 0, %s43
      %s44 = sphi 0, %s41
      %s45 = sphi 0, %s44
      %s61 = sphi 0, %s45
      %s77 = sphi 0, %s79
      %s80 = sphi 0, %s77
      %s81 = sphi 0, %s80
      %s97 = sphi 0, %s81
      %s101 = sphi 0, %s101
      %s103 = sphi 0, %s101
      %s104 = sphi 0, %s103
      %s118 = sphi 0, %s104
      %s122 = sphi 0, %s122
      %s124 = sphi 0, %s122
      %s125 = sphi 0, %s124
      %s139 = sphi 0, %s125
      %s143 = sphi 0, %s143
      %s145 = sphi 0, %s143
      %s146 = sphi 0, %s145
      %s160 = sphi 0, %s146
      %s164 = sphi 0, %s164
      %s166 = sphi 0, %s164
      %s167 = sphi 0, %s166
      %s181 = sphi 0, %s167
      %s185 = sphi 0, %s185
      %s187 = sphi 0, %s185
      %s188 = sphi 0, %s187
      %s202 = sphi 0, %s188
      %s206 = sphi 0, %s206
      %s208 = sphi 0, %s206
      %s209 = sphi 0, %s208
      %s223 = sphi 0, %s209
      %s231 = sphi 0, %s233
      %s234 = sphi 0, %s231
      %s235 = sphi 0, %s234
      %s251 = sphi 0, %s235
    $region4: #{lhrh_forward.1} parent=1 // loop_header_branch
      %20 = sbr.rel (%p18) target = $region8
    $region5: #{lhrh_forward.1} parent=1 // loop_body
      %s22 = ssub.s32 %s17, 1
      %s23 = ssub.s32 %s17, 2
      %s30 = sadd.s32 1, %s25
      %p31 = scmp.ge.s32.totalorder %s30, 1
      %s32 = scalar_select %p31, 0, %s30
      %s33 = sadd.s32 1, %s24
      %s34 = scalar_select %p31, %s33, %s24
      %p35 = scmp.ge.s32.totalorder %s34, 2
      %s36 = scalar_select %p35, 0, %s34
      %s37 = ssub.s32 %s24, %s36
      %s38 = ssub.s32 %s25, %s32
      %s39 = sor.u32 %s37, %s38
      %p40 = scmp.eq.s32.totalorder %s39, 0
      %s42 = sadd.s32 %s41, 1
      %s43 = scalar_select %p40, %s41, %s42
      %p46 = pneg %p40
      %p47 = scmp.eq.s32.totalorder %s17, 1
      %p48 = por %p46, %p47
      %p49 = scmp.ne.s32.totalorder %s41, %s44
      %p50 = scmp.eq.s32.totalorder %s17, 0
      %p51 = por %p49, %p50
      %p52 = scmp.ne.s32.totalorder %s41, %s44
      %p53 = scmp.eq.s32.totalorder %s22, 1
      %p54 = por %p52, %p53
      %p55 = scmp.ne.s32.totalorder %s44, %s45
      %p56 = scmp.eq.s32.totalorder %s22, 0
      %p57 = por %p55, %p56
      %p58 = scmp.ne.s32.totalorder %s44, %s45
      %p59 = scmp.eq.s32.totalorder %s23, 1
      %p60 = por %p58, %p59
      %p62 = scmp.ne.s32.totalorder %s45, %s61
      %p63 = scmp.eq.s32.totalorder %s23, 0
      %p64 = por %p62, %p63
      %s65 = smul.u32 %s25, 16
      %s66 = ssub.s32 %s65, 1
      %p67 = scmp.gt.s32.totalorder %s66, 0
      %s68 = scalar_select %p67, %s66, 0
      %s69 = smul.u32 %s32, 16
      %s70 = ssub.s32 %s69, 1
      %p71 = scmp.gt.s32.totalorder %s70, 0
      %s72 = scalar_select %p71, %s70, 0
      %s73 = ssub.s32 %s24, %s36
      %s74 = ssub.s32 %s68, %s72
      %s75 = sor.u32 %s73, %s74
      %p76 = scmp.eq.s32.totalorder %s75, 0
      %s78 = sadd.s32 %s77, 1
      %s79 = scalar_select %p76, %s77, %s78
      %p82 = pneg %p76
      %p83 = scmp.eq.s32.totalorder %s17, 1
      %p84 = por %p82, %p83
      %p85 = scmp.ne.s32.totalorder %s77, %s80
      %p86 = scmp.eq.s32.totalorder %s17, 0
      %p87 = por %p85, %p86
      %p88 = scmp.ne.s32.totalorder %s77, %s80
      %p89 = scmp.eq.s32.totalorder %s22, 1
      %p90 = por %p88, %p89
      %p91 = scmp.ne.s32.totalorder %s80, %s81
      %p92 = scmp.eq.s32.totalorder %s22, 0
      %p93 = por %p91, %p92
      %p94 = scmp.ne.s32.totalorder %s80, %s81
      %p95 = scmp.eq.s32.totalorder %s23, 1
      %p96 = por %p94, %p95
      %p98 = scmp.ne.s32.totalorder %s81, %s97
      %p99 = scmp.eq.s32.totalorder %s23, 0
      %p100 = por %p98, %p99
      %s102 = sadd.s32 %s101, 1
      %p105 = scmp.eq.s32.totalorder %s17, 1
      %p106 = scmp.ne.s32.totalorder %s101, %s103
      %p107 = scmp.eq.s32.totalorder %s17, 0
      %p108 = por %p106, %p107
      %p109 = scmp.ne.s32.totalorder %s101, %s103
      %p110 = scmp.eq.s32.totalorder %s22, 1
      %p111 = por %p109, %p110
      %p112 = scmp.ne.s32.totalorder %s103, %s104
      %p113 = scmp.eq.s32.totalorder %s22, 0
      %p114 = por %p112, %p113
      %p115 = scmp.ne.s32.totalorder %s103, %s104
      %p116 = scmp.eq.s32.totalorder %s23, 1
      %p117 = por %p115, %p116
      %p119 = scmp.ne.s32.totalorder %s104, %s118
      %p120 = scmp.eq.s32.totalorder %s23, 0
      %p121 = por %p119, %p120
      %s123 = sadd.s32 %s122, 1
      %p126 = scmp.eq.s32.totalorder %s17, 1
      %p127 = scmp.ne.s32.totalorder %s122, %s124
      %p128 = scmp.eq.s32.totalorder %s17, 0
      %p129 = por %p127, %p128
      %p130 = scmp.ne.s32.totalorder %s122, %s124
      %p131 = scmp.eq.s32.totalorder %s22, 1
      %p132 = por %p130, %p131
      %p133 = scmp.ne.s32.totalorder %s124, %s125
      %p134 = scmp.eq.s32.totalorder %s22, 0
      %p135 = por %p133, %p134
      %p136 = scmp.ne.s32.totalorder %s124, %s125
      %p137 = scmp.eq.s32.totalorder %s23, 1
      %p138 = por %p136, %p137
      %p140 = scmp.ne.s32.totalorder %s125, %s139
      %p141 = scmp.eq.s32.totalorder %s23, 0
      %p142 = por %p140, %p141
      %s144 = sadd.s32 %s143, 1
      %p147 = scmp.eq.s32.totalorder %s17, 1
      %p148 = scmp.ne.s32.totalorder %s143, %s145
      %p149 = scmp.eq.s32.totalorder %s17, 0
      %p150 = por %p148, %p149
      %p151 = scmp.ne.s32.totalorder %s143, %s145
      %p152 = scmp.eq.s32.totalorder %s22, 1
      %p153 = por %p151, %p152
      %p154 = scmp.ne.s32.totalorder %s145, %s146
      %p155 = scmp.eq.s32.totalorder %s22, 0
      %p156 = por %p154, %p155
      %p157 = scmp.ne.s32.totalorder %s145, %s146
      %p158 = scmp.eq.s32.totalorder %s23, 1
      %p159 = por %p157, %p158
      %p161 = scmp.ne.s32.totalorder %s146, %s160
      %p162 = scmp.eq.s32.totalorder %s23, 0
      %p163 = por %p161, %p162
      %s165 = sadd.s32 %s164, 1
      %p168 = scmp.eq.s32.totalorder %s17, 1
      %p169 = scmp.ne.s32.totalorder %s164, %s166
      %p170 = scmp.eq.s32.totalorder %s17, 0
      %p171 = por %p169, %p170
      %p172 = scmp.ne.s32.totalorder %s164, %s166
      %p173 = scmp.eq.s32.totalorder %s22, 1
      %p174 = por %p172, %p173
      %p175 = scmp.ne.s32.totalorder %s166, %s167
      %p176 = scmp.eq.s32.totalorder %s22, 0
      %p177 = por %p175, %p176
      %p178 = scmp.ne.s32.totalorder %s166, %s167
      %p179 = scmp.eq.s32.totalorder %s23, 1
      %p180 = por %p178, %p179
      %p182 = scmp.ne.s32.totalorder %s167, %s181
      %p183 = scmp.eq.s32.totalorder %s23, 0
      %p184 = por %p182, %p183
      %s186 = sadd.s32 %s185, 1
      %p189 = scmp.eq.s32.totalorder %s17, 1
      %p190 = scmp.ne.s32.totalorder %s185, %s187
      %p191 = scmp.eq.s32.totalorder %s17, 0
      %p192 = por %p190, %p191
      %p193 = scmp.ne.s32.totalorder %s185, %s187
      %p194 = scmp.eq.s32.totalorder %s22, 1
      %p195 = por %p193, %p194
      %p196 = scmp.ne.s32.totalorder %s187, %s188
      %p197 = scmp.eq.s32.totalorder %s22, 0
      %p198 = por %p196, %p197
      %p199 = scmp.ne.s32.totalorder %s187, %s188
      %p200 = scmp.eq.s32.totalorder %s23, 1
      %p201 = por %p199, %p200
      %p203 = scmp.ne.s32.totalorder %s188, %s202
      %p204 = scmp.eq.s32.totalorder %s23, 0
      %p205 = por %p203, %p204
      %s207 = sadd.s32 %s206, 1
      %p210 = scmp.eq.s32.totalorder %s17, 1
      %p211 = scmp.ne.s32.totalorder %s206, %s208
      %p212 = scmp.eq.s32.totalorder %s17, 0
      %p213 = por %p211, %p212
      %p214 = scmp.ne.s32.totalorder %s206, %s208
      %p215 = scmp.eq.s32.totalorder %s22, 1
      %p216 = por %p214, %p215
      %p217 = scmp.ne.s32.totalorder %s208, %s209
      %p218 = scmp.eq.s32.totalorder %s22, 0
      %p219 = por %p217, %p218
      %p220 = scmp.ne.s32.totalorder %s208, %s209
      %p221 = scmp.eq.s32.totalorder %s23, 1
      %p222 = por %p220, %p221
      %p224 = scmp.ne.s32.totalorder %s209, %s223
      %p225 = scmp.eq.s32.totalorder %s23, 0
      %p226 = por %p224, %p225
      %s227 = ssub.s32 %s24, %s36
      %s228 = ssub.s32 %s25, %s32
      %s229 = sor.u32 %s227, %s228
      %p230 = scmp.eq.s32.totalorder %s229, 0
      %s232 = sadd.s32 %s231, 1
      %s233 = scalar_select %p230, %s231, %s232
      %p236 = pneg %p230
      %p237 = scmp.eq.s32.totalorder %s17, 1
      %p238 = por %p236, %p237
      %p239 = scmp.ne.s32.totalorder %s231, %s234
      %p240 = scmp.eq.s32.totalorder %s17, 0
      %p241 = por %p239, %p240
      %p242 = scmp.ne.s32.totalorder %s231, %s234
      %p243 = scmp.eq.s32.totalorder %s22, 1
      %p244 = por %p242, %p243
      %p245 = scmp.ne.s32.totalorder %s234, %s235
      %p246 = scmp.eq.s32.totalorder %s22, 0
      %p247 = por %p245, %p246
      %p248 = scmp.ne.s32.totalorder %s234, %s235
      %p249 = scmp.eq.s32.totalorder %s23, 1
      %p250 = por %p248, %p249
      %p252 = scmp.ne.s32.totalorder %s235, %s251
      %p253 = scmp.eq.s32.totalorder %s23, 0
      %p254 = por %p252, %p253
      %p255 = scmp.le.s32.totalorder 1, %s17
      %p256 = scmp.lt.s32.totalorder %s17, 3
      %p257 = pnand %p255, %p256
      %p258 = pneg %p257
      // Predicated region
      $region9: #{lhrh_forward.1} parent=5 // pred_check
        _
      $region10: #{lhrh_forward.1} parent=5 // pred_check_branch
        %260 = sbr.rel (%p257) target = $region12
      $region11: #{lhrh_forward.1} parent=5 // pred_region
        %s261 = ssub.s32 %s17, 1
        // Predicated region
        $region13: #{lhrh_forward.1} parent=11 // pred_check
          %p262 = pneg %p114
        $region14: #{lhrh_forward.1} parent=11 // pred_check_branch
          %264 = sbr.rel (%p262) target = $region16
        $region15: #{lhrh_forward.1} parent=11 // pred_region
          _
        $region16: #{lhrh_forward.1} parent=11 // pred_fallthru
          _
        // Predicated region
        $region17: #{lhrh_forward.1} parent=11 // pred_check
          %p265 = pneg %p135
        $region18: #{lhrh_forward.1} parent=11 // pred_check_branch
          %267 = sbr.rel (%p265) target = $region20
        $region19: #{lhrh_forward.1} parent=11 // pred_region
          _
        $region20: #{lhrh_forward.1} parent=11 // pred_fallthru
          _
        // Predicated region
        $region21: #{lhrh_forward.1} parent=11 // pred_check
          %p268 = pneg %p156
        $region22: #{lhrh_forward.1} parent=11 // pred_check_branch
          %270 = sbr.rel (%p268) target = $region24
        $region23: #{lhrh_forward.1} parent=11 // pred_region
          _
        $region24: #{lhrh_forward.1} parent=11 // pred_fallthru
          _
        // Predicated region
        $region25: #{lhrh_forward.1} parent=11 // pred_check
          %p271 = pneg %p177
        $region26: #{lhrh_forward.1} parent=11 // pred_check_branch
          %273 = sbr.rel (%p271) target = $region28
        $region27: #{lhrh_forward.1} parent=11 // pred_region
          _
        $region28: #{lhrh_forward.1} parent=11 // pred_fallthru
          _
        // Predicated region
        $region29: #{lhrh_forward.1} parent=11 // pred_check
          %p274 = pneg %p198
        $region30: #{lhrh_forward.1} parent=11 // pred_check_branch
          %276 = sbr.rel (%p274) target = $region32
        $region31: #{lhrh_forward.1} parent=11 // pred_region
          _
        $region32: #{lhrh_forward.1} parent=11 // pred_fallthru
          _
        // Predicated region
        $region33: #{lhrh_forward.1} parent=11 // pred_check
          %p277 = pneg %p219
        $region34: #{lhrh_forward.1} parent=11 // pred_check_branch
          %279 = sbr.rel (%p277) target = $region36
        $region35: #{lhrh_forward.1} parent=11 // pred_region
          _
        $region36: #{lhrh_forward.1} parent=11 // pred_fallthru
          _
      $region12: #{lhrh_forward.1} parent=5 // pred_fallthru
        _
      %p280 = scmp.lt.s32.totalorder %s17, 2
      // Predicated region
      $region37: #{lhrh_forward.1} parent=5 // pred_check
        %p281 = pneg %p280
      $region38: #{lhrh_forward.1} parent=5 // pred_check_branch
        %283 = sbr.rel (%p281) target = $region40
      $region39: #{lhrh_forward.1} parent=5 // pred_region
        // Predicated region
        $region41: #{lhrh_forward.1} parent=39 // pred_check
          %p284 = pneg %p51
        $region42: #{lhrh_forward.1} parent=39 // pred_check_branch
          %286 = sbr.rel (%p284) target = $region44
        $region43: #{lhrh_forward.1} parent=39 // pred_region
          %s287 = smul.u32 16, %s25
          %p288 = scmp.lt.s32.totalorder %s24, 1
          %s289 = scalar_select %p288, %s24, 1
          %p290 = scmp.lt.s32.totalorder %s287, 15
          %s291 = scalar_select %p290, %s287, 15
          %s292 = smul.addr %s289, 16
          %s293 = sadd.s32 %s291, %s292
          %s294 = smul.addr %s293, 8
          %s295 = scalar_lea.vmem %s0, %s294
          %s296 = smul.u32 16, %s25
        $region44: #{lhrh_forward.1} parent=39 // pred_fallthru
          _
        // Predicated region
        $region45: #{lhrh_forward.1} parent=39 // pred_check
          %p297 = pneg %p87
        $region46: #{lhrh_forward.1} parent=39 // pred_check_branch
          %299 = sbr.rel (%p297) target = $region48
        $region47: #{lhrh_forward.1} parent=39 // pred_region
          %s300 = smul.u32 %s25, 16
          %s301 = ssub.s32 %s300, 1
          %p302 = scmp.gt.s32.totalorder %s301, 0
          %s303 = scalar_select %p302, %s301, 0
          %p304 = scmp.lt.s32.totalorder %s24, 1
          %s305 = scalar_select %p304, %s24, 1
          %p306 = scmp.lt.s32.totalorder %s303, 15
          %s307 = scalar_select %p306, %s303, 15
          %s308 = smul.addr %s305, 16
          %s309 = sadd.s32 %s307, %s308
          %s310 = smul.addr %s309, 8
          %s311 = scalar_lea.vmem %s1, %s310
          %s312 = smul.u32 %s25, 16
          %s313 = ssub.s32 %s312, 1
          %p314 = scmp.gt.s32.totalorder %s313, 0
          %s315 = scalar_select %p314, %s313, 0
        $region48: #{lhrh_forward.1} parent=39 // pred_fallthru
          _
      $region40: #{lhrh_forward.1} parent=5 // pred_fallthru
        _
      %p316 = scmp.le.s32.totalorder 1, %s17
      %p317 = scmp.lt.s32.totalorder %s17, 3
      %p318 = pnand %p316, %p317
      %p319 = pneg %p318
      // Predicated region
      $region49: #{lhrh_forward.1} parent=5 // pred_check
        _
      $region50: #{lhrh_forward.1} parent=5 // pred_check_branch
        %321 = sbr.rel (%p318) target = $region52
      $region51: #{lhrh_forward.1} parent=5 // pred_region
        %s322 = ssub.s32 %s17, 1
        %s323 = smul.u32 16, %s27
        %p324 = scmp.lt.s32.totalorder %s26, 1
        %s325 = scalar_select %p324, %s26, 1
        %p326 = scmp.lt.s32.totalorder %s323, 15
        %s327 = scalar_select %p326, %s323, 15
        %s328 = smul.addr %s325, 16
        %s329 = sadd.s32 %s327, %s328
        %s330 = smul.addr %s329, 8
        %s331 = scalar_lea.vmem %s0, %s330
        %p332 = pneg %p57
        %p333 = pneg %p54
        %s334 = smul.u32 %s27, 16
        %s335 = ssub.s32 %s334, 1
        %p336 = scmp.gt.s32.totalorder %s335, 0
        %s337 = scalar_select %p336, %s335, 0
        %p338 = scmp.lt.s32.totalorder %s26, 1
        %s339 = scalar_select %p338, %s26, 1
        %p340 = scmp.lt.s32.totalorder %s337, 15
        %s341 = scalar_select %p340, %s337, 15
        %s342 = smul.addr %s339, 16
        %s343 = sadd.s32 %s341, %s342
        %s344 = smul.addr %s343, 8
        %s345 = scalar_lea.vmem %s1, %s344
        %p346 = pneg %p93
        %p347 = pneg %p90
        %p348 = pneg %p114
        %p349 = pneg %p111
        %p350 = pneg %p135
        %p351 = pneg %p132
        %p352 = pneg %p156
        %p353 = pneg %p153
        %p354 = pneg %p177
        %p355 = pneg %p174
        %p356 = pneg %p198
        %p357 = pneg %p195
        %p358 = pneg %p219
        %p359 = pneg %p216
        %p360 = pneg %p247
        %p361 = pneg %p244
        %s362 = sand.u32 %s234, 1
        %s363 = scalar_lea.sflag [#allocation4], %s362
        %s364 = sand.u32 %s234, 1
        %s365 = smul.addr %s364, 64
        %s366 = scalar_lea.vmem [#allocation3], %s365
        %s367 = smul.u32 16, %s27
        %p368 = scmp.lt.s32.totalorder %s26, 1
        %s369 = scalar_select %p368, %s26, 1
        %p370 = scmp.lt.s32.totalorder %s367, 15
        %s371 = scalar_select %p370, %s367, 15
        %s372 = smul.addr %s369, 16
        %s373 = sadd.s32 %s371, %s372
        %s374 = smul.addr %s373, 8
        %s375 = scalar_lea.vmem %s0, %s374
        %s376 = smul.u32 16, %s27
        %s377 = smul.u32 %s27, 16
        %s378 = ssub.s32 %s377, 1
        %p379 = scmp.gt.s32.totalorder %s378, 0
        %s380 = scalar_select %p379, %s378, 0
        %p381 = scmp.lt.s32.totalorder %s26, 1
        %s382 = scalar_select %p381, %s26, 1
        %p383 = scmp.lt.s32.totalorder %s380, 15
        %s384 = scalar_select %p383, %s380, 15
        %s385 = smul.addr %s382, 16
        %s386 = sadd.s32 %s384, %s385
        %s387 = smul.addr %s386, 8
        %s388 = scalar_lea.vmem %s1, %s387
        %s389 = smul.u32 %s27, 16
        %s390 = ssub.s32 %s389, 1
        %p391 = scmp.gt.s32.totalorder %s390, 0
        %s392 = scalar_select %p391, %s390, 0
        %s393 = smul.u32 8, %s27
        %v395 = vld [vmem:[%s375] sm:$0xff]
        %v396 = vld [vmem:[%s375 + $0x8] sm:$0xff]
        %v397 = vld [vmem:[%s375 + $0x10] sm:$0xff]
        %v398 = vld [vmem:[%s375 + $0x18] sm:$0xff]
        %v399 = vld [vmem:[%s375 + $0x20] sm:$0xff]
        %v400 = vld [vmem:[%s375 + $0x28] sm:$0xff]
        %v401 = vld [vmem:[%s375 + $0x30] sm:$0xff]
        %v402 = vld [vmem:[%s375 + $0x38] sm:$0xff]
        %v403 = vld [vmem:[%s375 + $0x40] sm:$0xff]
        %v404 = vld [vmem:[%s375 + $0x48] sm:$0xff]
        %v405 = vld [vmem:[%s375 + $0x50] sm:$0xff]
        %v406 = vld [vmem:[%s375 + $0x58] sm:$0xff]
        %v407 = vld [vmem:[%s375 + $0x60] sm:$0xff]
        %v408 = vld [vmem:[%s375 + $0x68] sm:$0xff]
        %v409 = vld [vmem:[%s375 + $0x70] sm:$0xff]
        %v410 = vld [vmem:[%s375 + $0x78] sm:$0xff]
        %v411 = vld [vmem:[%s2] sm:$0x1]
        %v412 = vperm.slane %v411, 0
        %v413 = vmul.f32 %v395, %v412
        %v414 = vmul.f32 %v396, %v412
        %v415 = vmul.f32 %v397, %v412
        %v416 = vmul.f32 %v398, %v412
        %v417 = vmul.f32 %v399, %v412
        %v418 = vmul.f32 %v400, %v412
        %v419 = vmul.f32 %v401, %v412
        %v420 = vmul.f32 %v402, %v412
        %v421 = vmul.f32 %v403, %v412
        %v422 = vmul.f32 %v404, %v412
        %v423 = vmul.f32 %v405, %v412
        %v424 = vmul.f32 %v406, %v412
        %v425 = vmul.f32 %v407, %v412
        %v426 = vmul.f32 %v408, %v412
        %v427 = vmul.f32 %v409, %v412
        %v428 = vmul.f32 %v410, %v412
        %v429 = vld [vmem:[%s2 + $0x1] sm:$0x1]
        %v430 = vperm.slane %v429, 0
        %v431 = vadd.f32 %v413, %v430
        %v432 = vadd.f32 %v414, %v430
        %v433 = vadd.f32 %v415, %v430
        %v434 = vadd.f32 %v416, %v430
        %v435 = vadd.f32 %v417, %v430
        %v436 = vadd.f32 %v418, %v430
        %v437 = vadd.f32 %v419, %v430
        %v438 = vadd.f32 %v420, %v430
        %v439 = vadd.f32 %v421, %v430
        %v440 = vadd.f32 %v422, %v430
        %v441 = vadd.f32 %v423, %v430
        %v442 = vadd.f32 %v424, %v430
        %v443 = vadd.f32 %v425, %v430
        %v444 = vadd.f32 %v426, %v430
        %v445 = vadd.f32 %v427, %v430
        %v446 = vadd.f32 %v428, %v430
        %v447 = vmax.f32 %v431, 0.0
        %v448 = vmax.f32 %v432, 0.0
        %v449 = vmax.f32 %v433, 0.0
        %v450 = vmax.f32 %v434, 0.0
        %v451 = vmax.f32 %v435, 0.0
        %v452 = vmax.f32 %v436, 0.0
        %v453 = vmax.f32 %v437, 0.0
        %v454 = vmax.f32 %v438, 0.0
        %v455 = vmax.f32 %v439, 0.0
        %v456 = vmax.f32 %v440, 0.0
        %v457 = vmax.f32 %v441, 0.0
        %v458 = vmax.f32 %v442, 0.0
        %v459 = vmax.f32 %v443, 0.0
        %v460 = vmax.f32 %v444, 0.0
        %v461 = vmax.f32 %v445, 0.0
        %v462 = vmax.f32 %v446, 0.0
        %v463 = vpack.c.bf16 %v448, %v447
        %v464 = vpack.c.bf16 %v450, %v449
        %v465 = vpack.c.bf16 %v452, %v451
        %v466 = vpack.c.bf16 %v454, %v453
        %v467 = vpack.c.bf16 %v456, %v455
        %v468 = vpack.c.bf16 %v458, %v457
        %v469 = vpack.c.bf16 %v460, %v459
        %v470 = vpack.c.bf16 %v462, %v461
        %v471 = vld [vmem:[%s5] sm:$0xf]
        %v472 = vld [vmem:[%s3] sm:$0x1]
        %v474 = vperm.slane %v472, 0
        %vm476 = vcmask 64512
        %v478 = vsel %vm476, %v463, 0
        %v481 = vsel %vm476, %v464, 0
        %v484 = vsel %vm476, %v465, 0
        %v487 = vsel %vm476, %v466, 0
        %v490 = vsel %vm476, %v467, 0
        %v493 = vsel %vm476, %v468, 0
        %v496 = vsel %vm476, %v469, 0
        %v499 = vsel %vm476, %v470, 0
        %vm501 = vcmask 1043456
        %v503 = vsel %vm501, %v471, 0
        %505 = vmatpush.bf16.msra.mxu0 0
        %506 = vmatpush.bf16.msra.mxu0 0
        %507 = vmatpush.bf16.msra.mxu0 0
        %508 = vmatpush.bf16.msra.mxu0 0
        %509 = vmatpush.bf16.msra.mxu0 0
        %510 = vmatpush.bf16.msra.mxu0 0
        %511 = vmatpush.bf16.msra.mxu0 0
        %512 = vmatpush.bf16.msra.mxu0 %v503
        %513 = vmatmul.bf16.gmra.mxu0 %v478
        %v514 = vpop.f32.mrf.mxu0
        %v515 = vadd.f32 %v474, %v514
        %v516 = vpop.f32.mrf.mxu0
        %v517 = vadd.f32 %v474, %v516
        %518 = vmatmul.bf16.gmra.mxu0 %v481
        %v519 = vpop.f32.mrf.mxu0
        %v520 = vadd.f32 %v474, %v519
        %v521 = vpop.f32.mrf.mxu0
        %v522 = vadd.f32 %v474, %v521
        %523 = vmatmul.bf16.gmra.mxu0 %v484
        %v524 = vpop.f32.mrf.mxu0
        %v525 = vadd.f32 %v474, %v524
        %v526 = vpop.f32.mrf.mxu0
        %v527 = vadd.f32 %v474, %v526
        %528 = vmatmul.bf16.gmra.mxu0 %v487
        %v529 = vpop.f32.mrf.mxu0
        %v530 = vadd.f32 %v474, %v529
        %v531 = vpop.f32.mrf.mxu0
        %v532 = vadd.f32 %v474, %v531
        %533 = vmatmul.bf16.gmra.mxu0 %v490
        %v534 = vpop.f32.mrf.mxu0
        %v535 = vadd.f32 %v474, %v534
        %v536 = vpop.f32.mrf.mxu0
        %v537 = vadd.f32 %v474, %v536
        %538 = vmatmul.bf16.gmra.mxu0 %v493
        %v539 = vpop.f32.mrf.mxu0
        %v540 = vadd.f32 %v474, %v539
        %v541 = vpop.f32.mrf.mxu0
        %v542 = vadd.f32 %v474, %v541
        %543 = vmatmul.bf16.gmra.mxu0 %v496
        %v544 = vpop.f32.mrf.mxu0
        %v545 = vadd.f32 %v474, %v544
        %v546 = vpop.f32.mrf.mxu0
        %v547 = vadd.f32 %v474, %v546
        %548 = vmatmul.bf16.gmra.mxu0 %v499
        %v549 = vpop.f32.mrf.mxu0
        %v550 = vadd.f32 %v474, %v549
        %v551 = vpop.f32.mrf.mxu0
        %v552 = vadd.f32 %v474, %v551
        %553 = vdwg.mxu0
        %v554 = vmax.f32 %v515, 0.0
        %v555 = vmax.f32 %v517, 0.0
        %v556 = vmax.f32 %v520, 0.0
        %v557 = vmax.f32 %v522, 0.0
        %v558 = vmax.f32 %v525, 0.0
        %v559 = vmax.f32 %v527, 0.0
        %v560 = vmax.f32 %v530, 0.0
        %v561 = vmax.f32 %v532, 0.0
        %v562 = vmax.f32 %v535, 0.0
        %v563 = vmax.f32 %v537, 0.0
        %v564 = vmax.f32 %v540, 0.0
        %v565 = vmax.f32 %v542, 0.0
        %v566 = vmax.f32 %v545, 0.0
        %v567 = vmax.f32 %v547, 0.0
        %v568 = vmax.f32 %v550, 0.0
        %v569 = vmax.f32 %v552, 0.0
        %v570 = vpack.c.bf16 %v554, %v554
        %v571 = vpack.c.bf16 %v555, %v555
        %v572 = vpack.c.bf16 %v556, %v556
        %v573 = vpack.c.bf16 %v557, %v557
        %v574 = vpack.c.bf16 %v558, %v558
        %v575 = vpack.c.bf16 %v559, %v559
        %v576 = vpack.c.bf16 %v560, %v560
        %v577 = vpack.c.bf16 %v561, %v561
        %v578 = vpack.c.bf16 %v562, %v562
        %v579 = vpack.c.bf16 %v563, %v563
        %v580 = vpack.c.bf16 %v564, %v564
        %v581 = vpack.c.bf16 %v565, %v565
        %v582 = vpack.c.bf16 %v566, %v566
        %v583 = vpack.c.bf16 %v567, %v567
        %v584 = vpack.c.bf16 %v568, %v568
        %v585 = vpack.c.bf16 %v569, %v569
        %p586 = scmp.gt.s32.totalorder %s27, 0
        %s587 = scalar_select %p586, 1, 0
        %s588 = scvt.s32.f32 %s587
        %v589 = vld [vmem:[%s388] sm:$0xff]
        %v590 = vmul.f32 %v589, %v412
        %v591 = vadd.f32 %v590, %v430
        %v592 = vmax.f32 %v591, 0.0
        %v593 = vpack.c.bf16 %v592, %v592
        %v595 = vsel %vm476, %v593, 0
        %597 = vmatpush.bf16.msra.mxu0 0
        %598 = vmatpush.bf16.msra.mxu0 0
        %599 = vmatpush.bf16.msra.mxu0 0
        %600 = vmatpush.bf16.msra.mxu0 0
        %601 = vmatpush.bf16.msra.mxu0 0
        %602 = vmatpush.bf16.msra.mxu0 0
        %603 = vmatpush.bf16.msra.mxu0 0
        %604 = vmatpush.bf16.msra.mxu0 %v503
        %605 = vmatmul.bf16.gmra.mxu0 %v595
        %v606 = vpop.f32.mrf.mxu0
        %v607 = vadd.f32 %v474, %v606
        %v608 = vpop.f32.mrf.mxu0
        %609 = vdwg.mxu0
        %v610 = vmax.f32 %v607, 0.0
        %v611 = vstv %s588
        %v612 = vmul.f32 %v610, %v611
        %v613 = vpack.c.bf16 %v612, %v612
        %s614 = scalar_lea.vmem [#allocation2], 4
        %vm615 = vcmask 60416
        %616 = vst.msk [vmem:[%s614] sm:$0xf] %vm615, %v570
        %617 = vst.msk [vmem:[%s614 + $0x4] sm:$0xf] %vm615, %v571
        %618 = vst.msk [vmem:[%s614 + $0x8] sm:$0xf] %vm615, %v572
        %619 = vst.msk [vmem:[%s614 + $0xc] sm:$0xf] %vm615, %v573
        %620 = vst.msk [vmem:[%s614 + $0x10] sm:$0xf] %vm615, %v574
        %621 = vst.msk [vmem:[%s614 + $0x14] sm:$0xf] %vm615, %v575
        %622 = vst.msk [vmem:[%s614 + $0x18] sm:$0xf] %vm615, %v576
        %623 = vst.msk [vmem:[%s614 + $0x1c] sm:$0xf] %vm615, %v577
        %624 = vst.msk [vmem:[%s614 + $0x20] sm:$0xf] %vm615, %v578
        %625 = vst.msk [vmem:[%s614 + $0x24] sm:$0xf] %vm615, %v579
        %626 = vst.msk [vmem:[%s614 + $0x28] sm:$0xf] %vm615, %v580
        %627 = vst.msk [vmem:[%s614 + $0x2c] sm:$0xf] %vm615, %v581
        %628 = vst.msk [vmem:[%s614 + $0x30] sm:$0xf] %vm615, %v582
        %629 = vst.msk [vmem:[%s614 + $0x34] sm:$0xf] %vm615, %v583
        %630 = vst.msk [vmem:[%s614 + $0x38] sm:$0xf] %vm615, %v584
        %631 = vst.msk [vmem:[%s614 + $0x3c] sm:$0xf] %vm615, %v585
        %632 = vst.msk [vmem:[#allocation2] sm:$0xf] %vm615, %v613
        %v649 = vunpack.c.l.b16 %v570
        %v650 = vunpack.c.l.b16 %v571
        %v651 = vunpack.c.l.b16 %v572
        %v652 = vunpack.c.l.b16 %v573
        %v653 = vunpack.c.l.b16 %v574
        %v654 = vunpack.c.l.b16 %v575
        %v655 = vunpack.c.l.b16 %v576
        %v656 = vunpack.c.l.b16 %v577
        %v657 = vunpack.c.l.b16 %v578
        %v658 = vunpack.c.l.b16 %v579
        %v659 = vunpack.c.l.b16 %v580
        %v660 = vunpack.c.l.b16 %v581
        %v661 = vunpack.c.l.b16 %v582
        %v662 = vunpack.c.l.b16 %v583
        %v663 = vunpack.c.l.b16 %v584
        %v664 = vunpack.c.l.b16 %v585
        %v665 = vpack.c.b16 %v649, %v649
        %v666 = vpack.c.b16 %v650, %v650
        %v667 = vpack.c.b16 %v651, %v651
        %v668 = vpack.c.b16 %v652, %v652
        %v669 = vpack.c.b16 %v653, %v653
        %v670 = vpack.c.b16 %v654, %v654
        %v671 = vpack.c.b16 %v655, %v655
        %v672 = vpack.c.b16 %v656, %v656
        %v673 = vpack.c.b16 %v657, %v657
        %v674 = vpack.c.b16 %v658, %v658
        %v675 = vpack.c.b16 %v659, %v659
        %v676 = vpack.c.b16 %v660, %v660
        %v677 = vpack.c.b16 %v661, %v661
        %v678 = vpack.c.b16 %v662, %v662
        %v679 = vpack.c.b16 %v663, %v663
        %v680 = vpack.c.b16 %v664, %v664
        %v682 = vshrl.u32 %v665, 16
        %v684 = vrot.slane %v682, 7
        %v685 = vshll.u32 %v665, 16
        %v687 = vor.u32 %v684, %v685
        %v689 = vshrl.u32 %v666, 16
        %v691 = vrot.slane %v689, 7
        %v692 = vshll.u32 %v666, 16
        %v694 = vor.u32 %v691, %v692
        %v696 = vshrl.u32 %v667, 16
        %v698 = vrot.slane %v696, 7
        %v699 = vshll.u32 %v667, 16
        %v701 = vor.u32 %v698, %v699
        %v703 = vshrl.u32 %v668, 16
        %v705 = vrot.slane %v703, 7
        %v706 = vshll.u32 %v668, 16
        %v708 = vor.u32 %v705, %v706
        %v710 = vshrl.u32 %v669, 16
        %v712 = vrot.slane %v710, 7
        %v713 = vshll.u32 %v669, 16
        %v715 = vor.u32 %v712, %v713
        %v717 = vshrl.u32 %v670, 16
        %v719 = vrot.slane %v717, 7
        %v720 = vshll.u32 %v670, 16
        %v722 = vor.u32 %v719, %v720
        %v724 = vshrl.u32 %v671, 16
        %v726 = vrot.slane %v724, 7
        %v727 = vshll.u32 %v671, 16
        %v729 = vor.u32 %v726, %v727
        %v731 = vshrl.u32 %v672, 16
        %v733 = vrot.slane %v731, 7
        %v734 = vshll.u32 %v672, 16
        %v736 = vor.u32 %v733, %v734
        %v738 = vshrl.u32 %v673, 16
        %v740 = vrot.slane %v738, 7
        %v741 = vshll.u32 %v673, 16
        %v743 = vor.u32 %v740, %v741
        %v745 = vshrl.u32 %v674, 16
        %v747 = vrot.slane %v745, 7
        %v748 = vshll.u32 %v674, 16
        %v750 = vor.u32 %v747, %v748
        %v752 = vshrl.u32 %v675, 16
        %v754 = vrot.slane %v752, 7
        %v755 = vshll.u32 %v675, 16
        %v757 = vor.u32 %v754, %v755
        %v759 = vshrl.u32 %v676, 16
        %v761 = vrot.slane %v759, 7
        %v762 = vshll.u32 %v676, 16
        %v764 = vor.u32 %v761, %v762
        %v766 = vshrl.u32 %v677, 16
        %v768 = vrot.slane %v766, 7
        %v769 = vshll.u32 %v677, 16
        %v771 = vor.u32 %v768, %v769
        %v773 = vshrl.u32 %v678, 16
        %v775 = vrot.slane %v773, 7
        %v776 = vshll.u32 %v678, 16
        %v778 = vor.u32 %v775, %v776
        %v780 = vshrl.u32 %v679, 16
        %v782 = vrot.slane %v780, 7
        %v783 = vshll.u32 %v679, 16
        %v785 = vor.u32 %v782, %v783
        %v787 = vshrl.u32 %v680, 16
        %v789 = vrot.slane %v787, 7
        %v790 = vshll.u32 %v680, 16
        %v792 = vor.u32 %v789, %v790
        %793 = vrot.lane.b32.xlu0 %v687, 124
        %v794 = vpop.permute.xlu0 %793
        %795 = vrot.lane.b32.xlu0 %v694, 124
        %v796 = vpop.permute.xlu0 %795
        %797 = vrot.lane.b32.xlu0 %v701, 124
        %v798 = vpop.permute.xlu0 %797
        %799 = vrot.lane.b32.xlu0 %v708, 124
        %v800 = vpop.permute.xlu0 %799
        %801 = vrot.lane.b32.xlu0 %v715, 124
        %v802 = vpop.permute.xlu0 %801
        %803 = vrot.lane.b32.xlu0 %v722, 124
        %v804 = vpop.permute.xlu0 %803
        %805 = vrot.lane.b32.xlu0 %v729, 124
        %v806 = vpop.permute.xlu0 %805
        %807 = vrot.lane.b32.xlu0 %v736, 124
        %v808 = vpop.permute.xlu0 %807
        %809 = vrot.lane.b32.xlu0 %v743, 124
        %v810 = vpop.permute.xlu0 %809
        %811 = vrot.lane.b32.xlu0 %v750, 124
        %v812 = vpop.permute.xlu0 %811
        %813 = vrot.lane.b32.xlu0 %v757, 124
        %v814 = vpop.permute.xlu0 %813
        %815 = vrot.lane.b32.xlu0 %v764, 124
        %v816 = vpop.permute.xlu0 %815
        %817 = vrot.lane.b32.xlu0 %v771, 124
        %v818 = vpop.permute.xlu0 %817
        %819 = vrot.lane.b32.xlu0 %v778, 124
        %v820 = vpop.permute.xlu0 %819
        %821 = vrot.lane.b32.xlu0 %v785, 124
        %v822 = vpop.permute.xlu0 %821
        %823 = vrot.lane.b32.xlu0 %v792, 124
        %v824 = vpop.permute.xlu0 %823
        %vm841 = vcmask 1040384
        %vm842 = vsmask.f32 256
        %vm843 = vmand %vm841, %vm842
        %v844 = vsel %vm843, 0, %v794
        %v845 = vsel %vm843, 0, %v796
        %v846 = vsel %vm843, 0, %v798
        %v847 = vsel %vm843, 0, %v800
        %v848 = vsel %vm843, 0, %v802
        %v849 = vsel %vm843, 0, %v804
        %v850 = vsel %vm843, 0, %v806
        %v851 = vsel %vm843, 0, %v808
        %v852 = vsel %vm843, 0, %v810
        %v853 = vsel %vm843, 0, %v812
        %v854 = vsel %vm843, 0, %v814
        %v855 = vsel %vm843, 0, %v816
        %v856 = vsel %vm843, 0, %v818
        %v857 = vsel %vm843, 0, %v820
        %v858 = vsel %vm843, 0, %v822
        %v859 = vsel %vm843, 0, %v824
        %v876 = vunpack.c.l.b16 %v844
        %v877 = vunpack.c.l.b16 %v845
        %v878 = vunpack.c.l.b16 %v846
        %v879 = vunpack.c.l.b16 %v847
        %v880 = vunpack.c.l.b16 %v848
        %v881 = vunpack.c.l.b16 %v849
        %v882 = vunpack.c.l.b16 %v850
        %v883 = vunpack.c.l.b16 %v851
        %v884 = vunpack.c.l.b16 %v852
        %v885 = vunpack.c.l.b16 %v853
        %v886 = vunpack.c.l.b16 %v854
        %v887 = vunpack.c.l.b16 %v855
        %v888 = vunpack.c.l.b16 %v856
        %v889 = vunpack.c.l.b16 %v857
        %v890 = vunpack.c.l.b16 %v858
        %v891 = vunpack.c.l.b16 %v859
        %v892 = vpack.c.b16 %v876, %v876
        %v893 = vpack.c.b16 %v877, %v877
        %v894 = vpack.c.b16 %v878, %v878
        %v895 = vpack.c.b16 %v879, %v879
        %v896 = vpack.c.b16 %v880, %v880
        %v897 = vpack.c.b16 %v881, %v881
        %v898 = vpack.c.b16 %v882, %v882
        %v899 = vpack.c.b16 %v883, %v883
        %v900 = vpack.c.b16 %v884, %v884
        %v901 = vpack.c.b16 %v885, %v885
        %v902 = vpack.c.b16 %v886, %v886
        %v903 = vpack.c.b16 %v887, %v887
        %v904 = vpack.c.b16 %v888, %v888
        %v905 = vpack.c.b16 %v889, %v889
        %v906 = vpack.c.b16 %v890, %v890
        %v907 = vpack.c.b16 %v891, %v891
        %908 = vrot.lane.b32.xlu0 %v892, 8
        %v909 = vpop.permute.xlu0 %908
        %910 = vrot.lane.b32.xlu0 %v893, 8
        %v911 = vpop.permute.xlu0 %910
        %912 = vrot.lane.b32.xlu0 %v894, 8
        %v913 = vpop.permute.xlu0 %912
        %914 = vrot.lane.b32.xlu0 %v895, 8
        %v915 = vpop.permute.xlu0 %914
        %916 = vrot.lane.b32.xlu0 %v896, 8
        %v917 = vpop.permute.xlu0 %916
        %918 = vrot.lane.b32.xlu0 %v897, 8
        %v919 = vpop.permute.xlu0 %918
        %920 = vrot.lane.b32.xlu0 %v898, 8
        %v921 = vpop.permute.xlu0 %920
        %922 = vrot.lane.b32.xlu0 %v899, 8
        %v923 = vpop.permute.xlu0 %922
        %924 = vrot.lane.b32.xlu0 %v900, 8
        %v925 = vpop.permute.xlu0 %924
        %926 = vrot.lane.b32.xlu0 %v901, 8
        %v927 = vpop.permute.xlu0 %926
        %928 = vrot.lane.b32.xlu0 %v902, 8
        %v929 = vpop.permute.xlu0 %928
        %930 = vrot.lane.b32.xlu0 %v903, 8
        %v931 = vpop.permute.xlu0 %930
        %932 = vrot.lane.b32.xlu0 %v904, 8
        %v933 = vpop.permute.xlu0 %932
        %934 = vrot.lane.b32.xlu0 %v905, 8
        %v935 = vpop.permute.xlu0 %934
        %936 = vrot.lane.b32.xlu0 %v906, 8
        %v937 = vpop.permute.xlu0 %936
        %938 = vrot.lane.b32.xlu0 %v907, 8
        %v939 = vpop.permute.xlu0 %938
        %vm956 = vcmask 93248
        %957 = vst.msk [vmem:[%s614] sm:$0xf] %vm956, %v909
        %958 = vst.msk [vmem:[%s614 + $0x4] sm:$0xf] %vm956, %v911
        %959 = vst.msk [vmem:[%s614 + $0x8] sm:$0xf] %vm956, %v913
        %960 = vst.msk [vmem:[%s614 + $0xc] sm:$0xf] %vm956, %v915
        %961 = vst.msk [vmem:[%s614 + $0x10] sm:$0xf] %vm956, %v917
        %962 = vst.msk [vmem:[%s614 + $0x14] sm:$0xf] %vm956, %v919
        %963 = vst.msk [vmem:[%s614 + $0x18] sm:$0xf] %vm956, %v921
        %964 = vst.msk [vmem:[%s614 + $0x1c] sm:$0xf] %vm956, %v923
        %965 = vst.msk [vmem:[%s614 + $0x20] sm:$0xf] %vm956, %v925
        %966 = vst.msk [vmem:[%s614 + $0x24] sm:$0xf] %vm956, %v927
        %967 = vst.msk [vmem:[%s614 + $0x28] sm:$0xf] %vm956, %v929
        %968 = vst.msk [vmem:[%s614 + $0x2c] sm:$0xf] %vm956, %v931
        %969 = vst.msk [vmem:[%s614 + $0x30] sm:$0xf] %vm956, %v933
        %970 = vst.msk [vmem:[%s614 + $0x34] sm:$0xf] %vm956, %v935
        %971 = vst.msk [vmem:[%s614 + $0x38] sm:$0xf] %vm956, %v937
        %972 = vst.msk [vmem:[%s614 + $0x3c] sm:$0xf] %vm956, %v939
        %v974 = vunpack.c.l.b16 %v613
        %v975 = vpack.c.b16 %v974, %v974
        %v977 = vshrl.u32 %v975, 16
        %v979 = vrot.slane %v977, 7
        %v980 = vshll.u32 %v975, 16
        %v982 = vor.u32 %v979, %v980
        %983 = vrot.lane.b32.xlu0 %v982, 124
        %v984 = vpop.permute.xlu0 %983
        %v986 = vsel %vm843, 0, %v984
        %v988 = vunpack.c.l.b16 %v986
        %v989 = vpack.c.b16 %v988, %v988
        %990 = vrot.lane.b32.xlu0 %v989, 8
        %v991 = vpop.permute.xlu0 %990
        %993 = vst.msk [vmem:[#allocation2] sm:$0xf] %vm956, %v991
        %v994 = vld [vmem:[#allocation2] sm:$0xf]
        %v995 = vld [vmem:[#allocation2 + $0x4] sm:$0xf]
        %v996 = vld [vmem:[#allocation2 + $0x8] sm:$0xf]
        %v997 = vld [vmem:[#allocation2 + $0xc] sm:$0xf]
        %v998 = vld [vmem:[#allocation2 + $0x10] sm:$0xf]
        %v999 = vld [vmem:[#allocation2 + $0x14] sm:$0xf]
        %v1000 = vld [vmem:[#allocation2 + $0x18] sm:$0xf]
        %v1001 = vld [vmem:[#allocation2 + $0x1c] sm:$0xf]
        %v1002 = vld [vmem:[#allocation2 + $0x20] sm:$0xf]
        %v1003 = vld [vmem:[#allocation2 + $0x24] sm:$0xf]
        %v1004 = vld [vmem:[#allocation2 + $0x28] sm:$0xf]
        %v1005 = vld [vmem:[#allocation2 + $0x2c] sm:$0xf]
        %v1006 = vld [vmem:[#allocation2 + $0x30] sm:$0xf]
        %v1007 = vld [vmem:[#allocation2 + $0x34] sm:$0xf]
        %v1008 = vld [vmem:[#allocation2 + $0x38] sm:$0xf]
        %v1009 = vld [vmem:[#allocation2 + $0x3c] sm:$0xf]
        %v1010 = vld [vmem:[#allocation2 + $0x40] sm:$0xf]
        %v1011 = vld [vmem:[%s6] sm:$0xf]
        %v1012 = vld [vmem:[%s6 + $0x4] sm:$0x3]
        %s1013 = scalar_lea.vmem %s6, 8
        %v1014 = vld [vmem:[%s1013] sm:$0xf]
        %v1015 = vld [vmem:[%s1013 + $0x4] sm:$0x3]
        %v1024 = vunpack.c.l.b16 %v995
        %v1025 = vunpack.c.l.b16 %v997
        %v1026 = vunpack.c.l.b16 %v999
        %v1027 = vunpack.c.l.b16 %v1001
        %v1028 = vunpack.c.l.b16 %v1003
        %v1029 = vunpack.c.l.b16 %v1005
        %v1030 = vunpack.c.l.b16 %v1007
        %v1031 = vunpack.c.l.b16 %v1009
        %v1032 = vpack.c.b16 %v1025, %v1024
        %v1033 = vpack.c.b16 %v1027, %v1026
        %v1034 = vpack.c.b16 %v1029, %v1028
        %v1035 = vpack.c.b16 %v1031, %v1030
        %v1038 = vunpack.c.l.b16 %v1014
        %v1039 = vunpack.c.l.b16 %v1015
        %v1040 = vpack.c.b16 %v1039, %v1038
        %vm1041 = vcmask 97280
        %v1043 = vsel %vm1041, %v1032, 0
        %v1046 = vsel %vm1041, %v1033, 0
        %v1049 = vsel %vm1041, %v1034, 0
        %v1052 = vsel %vm1041, %v1035, 0
        %vm1054 = vcmask 1045504
        %v1056 = vsel %vm1054, %v1040, 0
        %1058 = vmatpush.bf16.msra.mxu0 0
        %1059 = vmatpush.bf16.msra.mxu0 0
        %1060 = vmatpush.bf16.msra.mxu0 0
        %1061 = vmatpush.bf16.msra.mxu0 0
        %1062 = vmatpush.bf16.msra.mxu0 0
        %1063 = vmatpush.bf16.msra.mxu0 0
        %1064 = vmatpush.bf16.msra.mxu0 0
        %1065 = vmatpush.bf16.msra.mxu0 %v1056
        %1066 = vmatmul.bf16.gmra.mxu0 %v1043
        %v1067 = vpop.f32.mrf.mxu0
        %v1068 = vadd.f32 0.0, %v1067
        %v1069 = vpop.f32.mrf.mxu0
        %v1070 = vadd.f32 0.0, %v1069
        %1071 = vmatmul.bf16.gmra.mxu0 %v1046
        %v1072 = vpop.f32.mrf.mxu0
        %v1073 = vadd.f32 0.0, %v1072
        %v1074 = vpop.f32.mrf.mxu0
        %v1075 = vadd.f32 0.0, %v1074
        %1076 = vmatmul.bf16.gmra.mxu0 %v1049
        %v1077 = vpop.f32.mrf.mxu0
        %v1078 = vadd.f32 0.0, %v1077
        %v1079 = vpop.f32.mrf.mxu0
        %v1080 = vadd.f32 0.0, %v1079
        %1081 = vmatmul.bf16.gmra.mxu0 %v1052
        %v1082 = vpop.f32.mrf.mxu0
        %v1083 = vadd.f32 0.0, %v1082
        %v1084 = vpop.f32.mrf.mxu0
        %v1085 = vadd.f32 0.0, %v1084
        %1086 = vdwg.mxu0
        %v1095 = vunpack.c.l.b16 %v994
        %v1096 = vunpack.c.l.b16 %v996
        %v1097 = vunpack.c.l.b16 %v998
        %v1098 = vunpack.c.l.b16 %v1000
        %v1099 = vunpack.c.l.b16 %v1002
        %v1100 = vunpack.c.l.b16 %v1004
        %v1101 = vunpack.c.l.b16 %v1006
        %v1102 = vunpack.c.l.b16 %v1008
        %v1103 = vpack.c.b16 %v1096, %v1095
        %v1104 = vpack.c.b16 %v1098, %v1097
        %v1105 = vpack.c.b16 %v1100, %v1099
        %v1106 = vpack.c.b16 %v1102, %v1101
        %v1109 = vunpack.c.l.b16 %v1011
        %v1110 = vunpack.c.l.b16 %v1012
        %v1111 = vpack.c.b16 %v1110, %v1109
        %v1113 = vsel %vm1041, %v1103, 0
        %v1116 = vsel %vm1041, %v1104, 0
        %v1119 = vsel %vm1041, %v1105, 0
        %v1122 = vsel %vm1041, %v1106, 0
        %v1125 = vsel %vm1054, %v1111, 0
        %1127 = vmatpush.bf16.msra.mxu0 0
        %1128 = vmatpush.bf16.msra.mxu0 0
        %1129 = vmatpush.bf16.msra.mxu0 0
        %1130 = vmatpush.bf16.msra.mxu0 0
        %1131 = vmatpush.bf16.msra.mxu0 0
        %1132 = vmatpush.bf16.msra.mxu0 0
        %1133 = vmatpush.bf16.msra.mxu0 0
        %1134 = vmatpush.bf16.msra.mxu0 %v1125
        %1135 = vmatmul.bf16.gmra.mxu0 %v1113
        %v1136 = vpop.f32.mrf.mxu0
        %v1137 = vadd.f32 %v1068, %v1136
        %v1138 = vpop.f32.mrf.mxu0
        %v1139 = vadd.f32 %v1070, %v1138
        %1140 = vmatmul.bf16.gmra.mxu0 %v1116
        %v1141 = vpop.f32.mrf.mxu0
        %v1142 = vadd.f32 %v1073, %v1141
        %v1143 = vpop.f32.mrf.mxu0
        %v1144 = vadd.f32 %v1075, %v1143
        %1145 = vmatmul.bf16.gmra.mxu0 %v1119
        %v1146 = vpop.f32.mrf.mxu0
        %v1147 = vadd.f32 %v1078, %v1146
        %v1148 = vpop.f32.mrf.mxu0
        %v1149 = vadd.f32 %v1080, %v1148
        %1150 = vmatmul.bf16.gmra.mxu0 %v1122
        %v1151 = vpop.f32.mrf.mxu0
        %v1152 = vadd.f32 %v1083, %v1151
        %v1153 = vpop.f32.mrf.mxu0
        %v1154 = vadd.f32 %v1085, %v1153
        %1155 = vdwg.mxu0
        %s1156 = scalar_lea.vmem %s6, 16
        %v1157 = vld [vmem:[%s1156] sm:$0xf]
        %v1158 = vld [vmem:[%s1156 + $0x4] sm:$0x3]
        %v1160 = vunpack.c.l.b16 %v1010
        %v1161 = vpack.c.b16 %v1097, %v1096
        %v1162 = vpack.c.b16 %v1099, %v1098
        %v1163 = vpack.c.b16 %v1101, %v1100
        %v1164 = vpack.c.b16 %v1160, %v1102
        %v1167 = vunpack.c.l.b16 %v1157
        %v1168 = vunpack.c.l.b16 %v1158
        %v1169 = vpack.c.b16 %v1168, %v1167
        %v1171 = vsel %vm1041, %v1161, 0
        %v1174 = vsel %vm1041, %v1162, 0
        %v1177 = vsel %vm1041, %v1163, 0
        %v1180 = vsel %vm1041, %v1164, 0
        %v1183 = vsel %vm1054, %v1169, 0
        %1185 = vmatpush.bf16.msra.mxu0 0
        %1186 = vmatpush.bf16.msra.mxu0 0
        %1187 = vmatpush.bf16.msra.mxu0 0
        %1188 = vmatpush.bf16.msra.mxu0 0
        %1189 = vmatpush.bf16.msra.mxu0 0
        %1190 = vmatpush.bf16.msra.mxu0 0
        %1191 = vmatpush.bf16.msra.mxu0 0
        %1192 = vmatpush.bf16.msra.mxu0 %v1183
        %1193 = vmatmul.bf16.gmra.mxu0 %v1171
        %v1194 = vpop.f32.mrf.mxu0
        %v1195 = vadd.f32 0.0, %v1194
        %v1196 = vpop.f32.mrf.mxu0
        %v1197 = vadd.f32 0.0, %v1196
        %1198 = vmatmul.bf16.gmra.mxu0 %v1174
        %v1199 = vpop.f32.mrf.mxu0
        %v1200 = vadd.f32 0.0, %v1199
        %v1201 = vpop.f32.mrf.mxu0
        %v1202 = vadd.f32 0.0, %v1201
        %1203 = vmatmul.bf16.gmra.mxu0 %v1177
        %v1204 = vpop.f32.mrf.mxu0
        %v1205 = vadd.f32 0.0, %v1204
        %v1206 = vpop.f32.mrf.mxu0
        %v1207 = vadd.f32 0.0, %v1206
        %1208 = vmatmul.bf16.gmra.mxu0 %v1180
        %v1209 = vpop.f32.mrf.mxu0
        %v1210 = vadd.f32 0.0, %v1209
        %v1211 = vpop.f32.mrf.mxu0
        %v1212 = vadd.f32 0.0, %v1211
        %1213 = vdwg.mxu0
        %v1214 = vadd.f32 %v1137, %v1195
        %v1215 = vadd.f32 %v1139, %v1197
        %v1216 = vadd.f32 %v1142, %v1200
        %v1217 = vadd.f32 %v1144, %v1202
        %v1218 = vadd.f32 %v1147, %v1205
        %v1219 = vadd.f32 %v1149, %v1207
        %v1220 = vadd.f32 %v1152, %v1210
        %v1221 = vadd.f32 %v1154, %v1212
        %v1222 = vmax.f32 %v395, %v396
        %v1223 = vmax.f32 %v397, %v398
        %v1224 = vmax.f32 %v399, %v400
        %v1225 = vmax.f32 %v401, %v402
        %v1226 = vmax.f32 %v403, %v404
        %v1227 = vmax.f32 %v405, %v406
        %v1228 = vmax.f32 %v407, %v408
        %v1229 = vmax.f32 %v409, %v410
        %1238 = vrot.lane.b32.xlu0 %v1222, 124
        %v1239 = vpop.permute.xlu0 %1238
        %1240 = vrot.lane.b32.xlu0 %v1223, 124
        %v1241 = vpop.permute.xlu0 %1240
        %1242 = vrot.lane.b32.xlu0 %v1224, 124
        %v1243 = vpop.permute.xlu0 %1242
        %1244 = vrot.lane.b32.xlu0 %v1225, 124
        %v1245 = vpop.permute.xlu0 %1244
        %1246 = vrot.lane.b32.xlu0 %v1226, 124
        %v1247 = vpop.permute.xlu0 %1246
        %1248 = vrot.lane.b32.xlu0 %v1227, 124
        %v1249 = vpop.permute.xlu0 %1248
        %1250 = vrot.lane.b32.xlu0 %v1228, 124
        %v1251 = vpop.permute.xlu0 %1250
        %1252 = vrot.lane.b32.xlu0 %v1229, 124
        %v1253 = vpop.permute.xlu0 %1252
        %v1262 = vmax.f32 %v1222, %v1239
        %v1263 = vmax.f32 %v1223, %v1241
        %v1264 = vmax.f32 %v1224, %v1243
        %v1265 = vmax.f32 %v1225, %v1245
        %v1266 = vmax.f32 %v1226, %v1247
        %v1267 = vmax.f32 %v1227, %v1249
        %v1268 = vmax.f32 %v1228, %v1251
        %v1269 = vmax.f32 %v1229, %v1253
        %v1270 = vld [vmem:[%s4] sm:$0x1]
        %v1271 = vperm.slane %v1270, 0
        %v1272 = vmul.f32 %v1262, %v1271
        %v1273 = vmul.f32 %v1263, %v1271
        %v1274 = vmul.f32 %v1264, %v1271
        %v1275 = vmul.f32 %v1265, %v1271
        %v1276 = vmul.f32 %v1266, %v1271
        %v1277 = vmul.f32 %v1267, %v1271
        %v1278 = vmul.f32 %v1268, %v1271
        %v1279 = vmul.f32 %v1269, %v1271
        %v1280 = vld [vmem:[%s4 + $0x1] sm:$0x1]
        %v1281 = vperm.slane %v1280, 0
        %v1282 = vadd.f32 %v1272, %v1281
        %v1283 = vadd.f32 %v1273, %v1281
        %v1284 = vadd.f32 %v1274, %v1281
        %v1285 = vadd.f32 %v1275, %v1281
        %v1286 = vadd.f32 %v1276, %v1281
        %v1287 = vadd.f32 %v1277, %v1281
        %v1288 = vadd.f32 %v1278, %v1281
        %v1289 = vadd.f32 %v1279, %v1281
        %v1290 = vmax.f32 %v1282, 0.0
        %v1291 = vmax.f32 %v1283, 0.0
        %v1292 = vmax.f32 %v1284, 0.0
        %v1293 = vmax.f32 %v1285, 0.0
        %v1294 = vmax.f32 %v1286, 0.0
        %v1295 = vmax.f32 %v1287, 0.0
        %v1296 = vmax.f32 %v1288, 0.0
        %v1297 = vmax.f32 %v1289, 0.0
        %v1298 = vpack.c.bf16 %v1291, %v1290
        %v1299 = vpack.c.bf16 %v1293, %v1292
        %v1300 = vpack.c.bf16 %v1295, %v1294
        %v1301 = vpack.c.bf16 %v1297, %v1296
        %v1302 = vld [vmem:[%s7] sm:$0x3]
        %vm1303 = vcmask 31744
        %v1305 = vsel %vm1303, %v1298, 0
        %v1308 = vsel %vm1303, %v1299, 0
        %v1311 = vsel %vm1303, %v1300, 0
        %v1314 = vsel %vm1303, %v1301, 0
        %vm1316 = vcmask 1041408
        %v1318 = vsel %vm1316, %v1302, 0
        %1320 = vmatpush.bf16.msra.mxu0 0
        %1321 = vmatpush.bf16.msra.mxu0 0
        %1322 = vmatpush.bf16.msra.mxu0 0
        %1323 = vmatpush.bf16.msra.mxu0 0
        %1324 = vmatpush.bf16.msra.mxu0 0
        %1325 = vmatpush.bf16.msra.mxu0 0
        %1326 = vmatpush.bf16.msra.mxu0 0
        %1327 = vmatpush.bf16.msra.mxu0 %v1318
        %1328 = vmatmul.bf16.gmra.mxu0 %v1305
        %v1329 = vpop.f32.mrf.mxu0
        %v1330 = vadd.f32 0.0, %v1329
        %v1331 = vpop.f32.mrf.mxu0
        %v1332 = vadd.f32 0.0, %v1331
        %1333 = vmatmul.bf16.gmra.mxu0 %v1308
        %v1334 = vpop.f32.mrf.mxu0
        %v1335 = vadd.f32 0.0, %v1334
        %v1336 = vpop.f32.mrf.mxu0
        %v1337 = vadd.f32 0.0, %v1336
        %1338 = vmatmul.bf16.gmra.mxu0 %v1311
        %v1339 = vpop.f32.mrf.mxu0
        %v1340 = vadd.f32 0.0, %v1339
        %v1341 = vpop.f32.mrf.mxu0
        %v1342 = vadd.f32 0.0, %v1341
        %1343 = vmatmul.bf16.gmra.mxu0 %v1314
        %v1344 = vpop.f32.mrf.mxu0
        %v1345 = vadd.f32 0.0, %v1344
        %v1346 = vpop.f32.mrf.mxu0
        %v1347 = vadd.f32 0.0, %v1346
        %1348 = vdwg.mxu0
        %1349 = vst.msk [vmem:[%s366] sm:$0xff] %vm1303, %v1214
        %1350 = vst.msk [vmem:[%s366 + $0x8] sm:$0xff] %vm1303, %v1215
        %1351 = vst.msk [vmem:[%s366 + $0x10] sm:$0xff] %vm1303, %v1216
        %1352 = vst.msk [vmem:[%s366 + $0x18] sm:$0xff] %vm1303, %v1217
        %1353 = vst.msk [vmem:[%s366 + $0x20] sm:$0xff] %vm1303, %v1218
        %1354 = vst.msk [vmem:[%s366 + $0x28] sm:$0xff] %vm1303, %v1219
        %1355 = vst.msk [vmem:[%s366 + $0x30] sm:$0xff] %vm1303, %v1220
        %1356 = vst.msk [vmem:[%s366 + $0x38] sm:$0xff] %vm1303, %v1221
        %1365 = vrot.lane.b32.xlu0 %v1330, 4
        %v1366 = vpop.permute.xlu0 %1365
        %1367 = vrot.lane.b32.xlu0 %v1332, 4
        %v1368 = vpop.permute.xlu0 %1367
        %1369 = vrot.lane.b32.xlu0 %v1335, 4
        %v1370 = vpop.permute.xlu0 %1369
        %1371 = vrot.lane.b32.xlu0 %v1337, 4
        %v1372 = vpop.permute.xlu0 %1371
        %1373 = vrot.lane.b32.xlu0 %v1340, 4
        %v1374 = vpop.permute.xlu0 %1373
        %1375 = vrot.lane.b32.xlu0 %v1342, 4
        %v1376 = vpop.permute.xlu0 %1375
        %1377 = vrot.lane.b32.xlu0 %v1345, 4
        %v1378 = vpop.permute.xlu0 %1377
        %1379 = vrot.lane.b32.xlu0 %v1347, 4
        %v1380 = vpop.permute.xlu0 %1379
        %vm1389 = vcmask 64544
        %1390 = vst.msk [vmem:[%s366] sm:$0xff] %vm1389, %v1366
        %1391 = vst.msk [vmem:[%s366 + $0x8] sm:$0xff] %vm1389, %v1368
        %1392 = vst.msk [vmem:[%s366 + $0x10] sm:$0xff] %vm1389, %v1370
        %1393 = vst.msk [vmem:[%s366 + $0x18] sm:$0xff] %vm1389, %v1372
        %1394 = vst.msk [vmem:[%s366 + $0x20] sm:$0xff] %vm1389, %v1374
        %1395 = vst.msk [vmem:[%s366 + $0x28] sm:$0xff] %vm1389, %v1376
        %1396 = vst.msk [vmem:[%s366 + $0x30] sm:$0xff] %vm1389, %v1378
        %1397 = vst.msk [vmem:[%s366 + $0x38] sm:$0xff] %vm1389, %v1380
        %s1398 = sand.u32 %s234, 1
        %s1399 = scalar_lea.sflag [#allocation4], %s1398
        %s1400 = sand.u32 %s234, 1
        %s1401 = smul.addr %s1400, 64
        %s1402 = scalar_lea.vmem [#allocation3], %s1401
        // Predicated region
        $region53: #{lhrh_forward.1} parent=51 // pred_check
          %p1403 = pneg %p244
        $region54: #{lhrh_forward.1} parent=51 // pred_check_branch
          %1405 = sbr.rel (%p1403) target = $region56
        $region55: #{lhrh_forward.1} parent=51 // pred_region
          %s1406 = smul.u32 8, %s27
          %1408 = vsyncadd %s1399, 0
          %s1409 = smul.addr %s26, 8
          %s1410 = sadd.s32 %s1406, %s1409
          %s1411 = smul.addr %s1410, 8
          %s1412 = scalar_lea.hbm %s8, %s1411
          %s1413 = sshll.u32 %s1402, 4
          %s1414 = int_to_ptr.vmem [resolvable:$true] %s1413
          %s1415 = sshll.u32 %s1412, 4
          %s1416 = int_to_ptr.hbm [resolvable:$true] %s1415
          %1421 = dma.vmem_to_hbm [thread:$0]  %s1414, 1024, %s1416, %s1399, 128, 128, 8
        $region56: #{lhrh_forward.1} parent=51 // pred_fallthru
          _
      $region52: #{lhrh_forward.1} parent=5 // pred_fallthru
        _
      %p1422 = scmp.le.s32.totalorder 2, %s17
      // Predicated region
      $region57: #{lhrh_forward.1} parent=5 // pred_check
        %p1423 = pneg %p1422
      $region58: #{lhrh_forward.1} parent=5 // pred_check_branch
        %1425 = sbr.rel (%p1423) target = $region60
      $region59: #{lhrh_forward.1} parent=5 // pred_region
        %s1426 = ssub.s32 %s17, 2
        // Predicated region
        $region61: #{lhrh_forward.1} parent=59 // pred_check
          %p1427 = pneg %p250
        $region62: #{lhrh_forward.1} parent=59 // pred_check_branch
          %1429 = sbr.rel (%p1427) target = $region64
        $region63: #{lhrh_forward.1} parent=59 // pred_region
          %s1430 = sand.u32 %s235, 1
          %s1431 = scalar_lea.sflag [#allocation4], %s1430
          %s1432 = sand.u32 %s235, 1
          %s1433 = smul.addr %s1432, 64
          %s1434 = scalar_lea.vmem [#allocation3], %s1433
          %1436 = dma.done %s1431, 1024
        $region64: #{lhrh_forward.1} parent=59 // pred_fallthru
          _
      $region60: #{lhrh_forward.1} parent=5 // pred_fallthru
        _
    $region6: #{lhrh_forward.1} parent=1 // loop_footer
      %s21 = sadd.s32 1, %s17
    $region7: #{lhrh_forward.1} parent=1 // loop_footer_branch
      %16 = sbr.rel target = $region3
    $region8: #{lhrh_forward.1} parent=1 // loop_exit
      _
    %1437 = vsyncpa [#allocation4], 1
    %s1438 = scalar_lea.sflag [#allocation4], 1
    %1439 = vsyncpa %s1438, 1

</llo_original>
